<compile_context>
chip_gen: v7x
topology: tpu7x:2x2x1
jax: 0.10.0
libtpu: 0.0.40
codegen_flags: <defaults>
</compile_context>

<pallas_src>
import jax
import jax.numpy as jnp
from jax.experimental import pallas as pl
from jax.experimental.pallas import tpu as pltpu


def _pixelwise_xcorr_kernel(
    ker_ref,     # (1, C, HkWk)   f32 template feature, flattened spatial
    srch_ref,    # (1, C, HsWs)   f32 search feature, flattened spatial
    wgT_ref,     # (HkWk, OC)     bf16 g 1x1-conv weight, BN scale folded, transposed
    biases_ref,  # (OC, 3)        f32 columns: [bn_bias | b1 | b2]
    w1_ref,      # (OC, OC)       bf16 CA fc1 weight
    w2_ref,      # (OC, OC)       bf16 CA fc2 weight
    out_ref,     # (1, OC, HsWs)  f32
):
    biases = biases_ref[...]                       # (OC, 3) f32, single tile
    bn_bias = biases[:, 0:1]                       # folded conv-bias + BN shift
    b1 = biases[:, 1:2]
    b2 = biases[:, 2:3]

    # In-kernel cast (VPU) -- no standalone HBM cast pass on the host side.
    ker = ker_ref[0].astype(jnp.bfloat16)          # (C, HkWk)
    srch = srch_ref[0]                             # (C, HsWs) f32

    # --- pg_xcorr + g conv, reassociated:  ((ker @ wgT) contracted with srch) ---
    # matmul1 (canonical, lane-dense 256-wide output):
    #   (C, HkWk) @ (HkWk, OC) -> (C, OC), f32 accumulation.
    wk = jnp.dot(ker, wgT_ref[...], preferred_element_type=jnp.float32)
    # matmul2: contract the channel dim (dim 0 of both operands), kept in f32
    # (K = C = 64, negligible MXU cost, tighter numerics):
    #   (C, OC) x (C, HsWs) -> (OC, HsWs).
    y = jax.lax.dot_general(
        wk, srch,
        dimension_numbers=(((0,), (0,)), ((), ())),
        preferred_element_type=jnp.float32)
    # BN(eval) with the scale already folded into wgT, then ReLU (f32 on VPU).
    y = jnp.maximum(y + bn_bias, 0.0)              # (OC, HsWs)

    # --- CAModule: global avg-pool -> fc1 -> ReLU -> fc2 -> sigmoid -> gate ---
    pooled = jnp.mean(y, axis=1, keepdims=True)    # (OC, 1) f32
    h = jnp.dot(w1_ref[...], pooled.astype(jnp.bfloat16),
                preferred_element_type=jnp.float32) + b1
    h = jnp.maximum(h, 0.0)
    a = jnp.dot(w2_ref[...], h.astype(jnp.bfloat16),
                preferred_element_type=jnp.float32) + b2
    a = jax.nn.sigmoid(a)                          # (OC, 1) f32 (EUP)

    out_ref[0] = (y * a).astype(out_ref.dtype)     # channel gating


def fold_params(params, *, eps=1e-5):
    """One-time parameter folding (call at model init, NOT per forward).

    Folds the BatchNorm(eval) scale into the g 1x1-conv weight, pre-transposes
    it to (HkWk, OC) for a canonical in-kernel contraction, packs the three
    per-channel bias vectors into a single (OC, 3) tile, and casts the MXU
    weight operands to bf16.
    """
    scale = params["bn_gamma"] / jnp.sqrt(params["bn_var"] + eps)
    wgT = jnp.transpose(scale[:, None] * params["wg"]).astype(jnp.bfloat16)
    bn_bias = (params["bg"] - params["bn_mean"]) * scale + params["bn_beta"]
    biases = jnp.stack(
        [bn_bias, params["b1"], params["b2"]], axis=1).astype(jnp.float32)
    return {
        "wgT": wgT,                                  # (HkWk, OC) bf16
        "biases": biases,                            # (OC, 3)    f32
        "w1": params["w1"].astype(jnp.bfloat16),     # (OC, OC)   bf16
        "w2": params["w2"].astype(jnp.bfloat16),     # (OC, OC)   bf16
    }


def pixelwise_xcorr(kernel_feat, search_feat, folded):
    """Forward pass. `folded` must come from fold_params() (computed once)."""
    B, C, Hk, Wk = kernel_feat.shape
    _, _, Hs, Ws = search_feat.shape
    HkWk, HsWs = Hk * Wk, Hs * Ws
    OC = folded["wgT"].shape[1]

    # Reshape only (metadata under jit) -- activations stay f32; the bf16 cast
    # happens inside the kernel on the VPU.
    ker = kernel_feat.reshape(B, C, HkWk)
    srch = search_feat.reshape(B, C, HsWs)

    out_flat = pl.pallas_call(
        _pixelwise_xcorr_kernel,
        out_shape=jax.ShapeDtypeStruct((B, OC, HsWs), jnp.float32),
        grid_spec=pltpu.PrefetchScalarGridSpec(
            num_scalar_prefetch=0,
            grid=(B,),
            in_specs=[
                pl.BlockSpec((1, C, HkWk), lambda b: (b, 0, 0)),
                pl.BlockSpec((1, C, HsWs), lambda b: (b, 0, 0)),
                # Grid-invariant weights (constant index maps -> DMA'd once).
                pl.BlockSpec((HkWk, OC), lambda b: (0, 0)),
                pl.BlockSpec((OC, 3), lambda b: (0, 0)),
                pl.BlockSpec((OC, OC), lambda b: (0, 0)),
                pl.BlockSpec((OC, OC), lambda b: (0, 0)),
            ],
            out_specs=pl.BlockSpec((1, OC, HsWs), lambda b: (b, 0, 0)),
        ),
        compiler_params=pltpu.CompilerParams(
            dimension_semantics=("parallel",)),
    )(ker, srch, folded["wgT"], folded["biases"], folded["w1"], folded["w2"])

    return out_flat.reshape(B, OC, Hs, Ws)


def reference(kernel_feat, search_feat, params, *, eps=1e-5):
    """Pure-JAX f32 reference mirroring the PyTorch forward (eval-mode BN)."""
    B, C, Hk, Wk = kernel_feat.shape
    _, _, Hs, Ws = search_feat.shape
    ker_t = kernel_feat.reshape(B, C, -1).transpose(0, 2, 1)
    srch = search_feat.reshape(B, C, -1)
    corr = jnp.einsum("bkc,bcs->bks", ker_t, srch, precision="highest")
    y = jnp.einsum("oc,bcs->bos", params["wg"], corr,
                   precision="highest") + params["bg"][None, :, None]
    y = ((y - params["bn_mean"][None, :, None])
         / jnp.sqrt(params["bn_var"][None, :, None] + eps)
         * params["bn_gamma"][None, :, None] + params["bn_beta"][None, :, None])
    y = jnp.maximum(y, 0.0)
    pooled = jnp.mean(y, axis=2)                                 # (B, OC)
    h = jnp.maximum(pooled @ params["w1"].T + params["b1"], 0.0)
    a = jax.nn.sigmoid(h @ params["w2"].T + params["b2"])
    out = y * a[:, :, None]
    return out.reshape(B, -1, Hs, Ws)


if __name__ == "__main__":
    # Small but module-consistent shapes: g expects 425 input channels, i.e.
    # Hk*Wk = 25*17 = 425; feature channels C = 64; search spatial 16x16.
    B, C = 2, 64
    Hk, Wk = 25, 17
    Hs, Ws = 16, 16
    OC, IC_G = 256, Hk * Wk  # g: Conv2d(425, 256, 1)

    key = jax.random.PRNGKey(0)
    ks = jax.random.split(key, 12)

    kernel_feat = jax.random.normal(ks[0], (B, C, Hk, Wk), jnp.float32)
    search_feat = jax.random.normal(ks[1], (B, C, Hs, Ws), jnp.float32)

    params = {
        # g = Conv2d(425, 256, 1) + BatchNorm2d(256)
        "wg": 0.02 * jax.random.normal(ks[2], (OC, IC_G), jnp.float32),
        "bg": 0.02 * jax.random.normal(ks[3], (OC,), jnp.float32),
        "bn_gamma": 1.0 + 0.05 * jax.random.normal(ks[4], (OC,), jnp.float32),
        "bn_beta": 0.05 * jax.random.normal(ks[5], (OC,), jnp.float32),
        "bn_mean": 0.1 * jax.random.normal(ks[6], (OC,), jnp.float32),
        "bn_var": 1.0 + 0.1 * jax.random.uniform(ks[7], (OC,), jnp.float32),
        # CAModule(channels=256, reduction=1): fc1/fc2 are 1x1 convs 256->256
        "w1": 0.05 * jax.random.normal(ks[8], (OC, OC), jnp.float32),
        "b1": 0.05 * jax.random.normal(ks[9], (OC,), jnp.float32),
        "w2": 0.05 * jax.random.normal(ks[10], (OC, OC), jnp.float32),
        "b2": 0.05 * jax.random.normal(ks[11], (OC,), jnp.float32),
    }

    # One-time parameter folding (hoisted out of the per-forward path).
    folded = jax.tree.map(jax.block_until_ready, fold_params(params))

    fwd = jax.jit(pixelwise_xcorr)
    out = jax.block_until_ready(fwd(kernel_feat, search_feat, folded))
    ref = jax.block_until_ready(reference(kernel_feat, search_feat, params))

    assert out.shape == (B, OC, Hs, Ws), out.shape
    # Kernel uses bf16 MXU operands for matmul1 / the CA matvecs (f32
    # accumulation, f32 matmul2), so compare with a normalized max-abs bound.
    max_err = float(jnp.max(jnp.abs(out - ref)))
    ref_scale = float(jnp.max(jnp.abs(ref)))
    assert max_err <= 3e-2 * ref_scale + 1e-3, (max_err, ref_scale)
    print("KERNEL_OK")
</pallas_src>

<mosaic_0001>
module attributes {stable_mosaic.version = 11 : i64} {
  func.func @_pixelwise_xcorr_kernel(%arg0: i32, %arg1: memref<1x64x425xf32, #tpu.memory_space<vmem>>, %arg2: memref<1x64x256xf32, #tpu.memory_space<vmem>>, %arg3: memref<425x256xbf16, #tpu.memory_space<vmem>>, %arg4: memref<256x3xf32, #tpu.memory_space<vmem>>, %arg5: memref<256x256xbf16, #tpu.memory_space<vmem>>, %arg6: memref<256x256xbf16, #tpu.memory_space<vmem>>, %arg7: memref<1x256x256xf32, #tpu.memory_space<vmem>>) attributes {dimension_semantics = [#tpu.dimension_semantics<parallel>], iteration_bounds = array<i64: 2>, scalar_prefetch = 0 : i64, scratch_operands = 0 : i64, tpu.core_type = #tpu.core_type<tc>, window_params = [{transform_indices = @transform_0, window_bounds = array<i64: 1, 64, 425>}, {transform_indices = @transform_1, window_bounds = array<i64: 1, 64, 256>}, {pipeline_mode = #tpu.pipeline_mode<synchronous>, transform_indices = @transform_2, window_bounds = array<i64: 425, 256>}, {pipeline_mode = #tpu.pipeline_mode<synchronous>, transform_indices = @transform_3, window_bounds = array<i64: 256, 3>}, {pipeline_mode = #tpu.pipeline_mode<synchronous>, transform_indices = @transform_4, window_bounds = array<i64: 256, 256>}, {pipeline_mode = #tpu.pipeline_mode<synchronous>, transform_indices = @transform_5, window_bounds = array<i64: 256, 256>}, {transform_indices = @transform_6, window_bounds = array<i64: 1, 256, 256>}]} {
    %c0 = arith.constant 0 : index
    %c0_0 = arith.constant 0 : index
    %0 = vector.load %arg4[%c0, %c0_0] : memref<256x3xf32, #tpu.memory_space<vmem>>, vector<256x3xf32>
    %1 = vector.extract_strided_slice %0 {offsets = [0, 0], sizes = [256, 1], strides = [1, 1]} : vector<256x3xf32> to vector<256x1xf32>
    %2 = vector.extract_strided_slice %0 {offsets = [0, 1], sizes = [256, 1], strides = [1, 1]} : vector<256x3xf32> to vector<256x1xf32>
    %3 = vector.extract_strided_slice %0 {offsets = [0, 2], sizes = [256, 1], strides = [1, 1]} : vector<256x3xf32> to vector<256x1xf32>
    %c0_1 = arith.constant 0 : index
    %c0_2 = arith.constant 0 : index
    %c0_3 = arith.constant 0 : index
    %4 = vector.load %arg1[%c0_1, %c0_2, %c0_3] : memref<1x64x425xf32, #tpu.memory_space<vmem>>, vector<1x64x425xf32>
    %5 = vector.shape_cast %4 : vector<1x64x425xf32> to vector<64x425xf32>
    %6 = arith.truncf %5 : vector<64x425xf32> to vector<64x425xbf16>
    %c0_4 = arith.constant 0 : index
    %c0_5 = arith.constant 0 : index
    %c0_6 = arith.constant 0 : index
    %7 = vector.load %arg2[%c0_4, %c0_5, %c0_6] : memref<1x64x256xf32, #tpu.memory_space<vmem>>, vector<1x64x256xf32>
    %8 = vector.shape_cast %7 : vector<1x64x256xf32> to vector<64x256xf32>
    %c0_7 = arith.constant 0 : index
    %c0_8 = arith.constant 0 : index
    %9 = vector.load %arg3[%c0_7, %c0_8] : memref<425x256xbf16, #tpu.memory_space<vmem>>, vector<425x256xbf16>
    %cst = arith.constant dense<0.000000e+00> : vector<64x256xf32>
    %10 = tpu.matmul %6, %9, %cst {dimension_numbers = #tpu.dot_dimension_numbers<[1], [0], [0], [1], [0, 0, 1, 1], [], []>} : vector<64x425xbf16>, vector<425x256xbf16>, vector<64x256xf32> -> vector<64x256xf32>
    %cst_9 = arith.constant dense<0.000000e+00> : vector<256x256xf32>
    %11 = tpu.matmul %10, %8, %cst_9 {dimension_numbers = #tpu.dot_dimension_numbers<[0], [0], [1], [1], [0, 1, 1, 1], [], []>} : vector<64x256xf32>, vector<64x256xf32>, vector<256x256xf32> -> vector<256x256xf32>
    %12 = vector.broadcast %1 : vector<256x1xf32> to vector<256x256xf32>
    %13 = arith.addf %11, %12 : vector<256x256xf32>
    %cst_10 = arith.constant 0.000000e+00 : f32
    %14 = vector.broadcast %cst_10 : f32 to vector<256x256xf32>
    %15 = arith.maximumf %13, %14 : vector<256x256xf32>
    %cst_11 = arith.constant dense<0.000000e+00> : vector<256xf32>
    %16 = vector.multi_reduction <add>, %15, %cst_11 [1] : vector<256x256xf32> to vector<256xf32>
    %17 = vector.shape_cast %16 : vector<256xf32> to vector<256x1xf32>
    %cst_12 = arith.constant 2.560000e+02 : f32
    %18 = vector.broadcast %cst_12 : f32 to vector<256x1xf32>
    %19 = arith.divf %17, %18 : vector<256x1xf32>
    %c0_13 = arith.constant 0 : index
    %c0_14 = arith.constant 0 : index
    %20 = vector.load %arg5[%c0_13, %c0_14] : memref<256x256xbf16, #tpu.memory_space<vmem>>, vector<256x256xbf16>
    %21 = arith.truncf %19 : vector<256x1xf32> to vector<256x1xbf16>
    %cst_15 = arith.constant dense<0.000000e+00> : vector<256x1xf32>
    %22 = tpu.matmul %20, %21, %cst_15 {dimension_numbers = #tpu.dot_dimension_numbers<[1], [0], [0], [1], [0, 0, 1, 1], [], []>} : vector<256x256xbf16>, vector<256x1xbf16>, vector<256x1xf32> -> vector<256x1xf32>
    %23 = arith.addf %22, %2 : vector<256x1xf32>
    %cst_16 = arith.constant 0.000000e+00 : f32
    %24 = vector.broadcast %cst_16 : f32 to vector<256x1xf32>
    %25 = arith.maximumf %23, %24 : vector<256x1xf32>
    %c0_17 = arith.constant 0 : index
    %c0_18 = arith.constant 0 : index
    %26 = vector.load %arg6[%c0_17, %c0_18] : memref<256x256xbf16, #tpu.memory_space<vmem>>, vector<256x256xbf16>
    %27 = arith.truncf %25 : vector<256x1xf32> to vector<256x1xbf16>
    %cst_19 = arith.constant dense<0.000000e+00> : vector<256x1xf32>
    %28 = tpu.matmul %26, %27, %cst_19 {dimension_numbers = #tpu.dot_dimension_numbers<[1], [0], [0], [1], [0, 0, 1, 1], [], []>} : vector<256x256xbf16>, vector<256x1xbf16>, vector<256x1xf32> -> vector<256x1xf32>
    %29 = arith.addf %28, %3 : vector<256x1xf32>
    %30 = arith.negf %29 : vector<256x1xf32>
    %31 = math.exp %30 : vector<256x1xf32>
    %cst_20 = arith.constant 1.000000e+00 : f32
    %32 = vector.broadcast %cst_20 : f32 to vector<256x1xf32>
    %33 = arith.addf %32, %31 : vector<256x1xf32>
    %34 = arith.divf %32, %33 : vector<256x1xf32>
    %35 = vector.broadcast %34 : vector<256x1xf32> to vector<256x256xf32>
    %36 = arith.mulf %15, %35 : vector<256x256xf32>
    %c0_21 = arith.constant 0 : index
    %c0_22 = arith.constant 0 : index
    %c0_23 = arith.constant 0 : index
    %37 = vector.load %arg7[%c0_21, %c0_22, %c0_23] : memref<1x256x256xf32, #tpu.memory_space<vmem>>, vector<1x256x256xf32>
    %38 = vector.shape_cast %37 : vector<1x256x256xf32> to vector<256x256xf32>
    %39 = vector.shape_cast %36 : vector<256x256xf32> to vector<1x256x256xf32>
    tpu.vector_store %arg7[%c0_21, %c0_22, %c0_23], %39 {strides = array<i32>} : memref<1x256x256xf32, #tpu.memory_space<vmem>>, vector<1x256x256xf32>,
    return
  }
  func.func @transform_0(%arg0: i32) -> (i32, i32, i32) {
    %c0_i32 = arith.constant 0 : i32
    %c0_i32_0 = arith.constant 0 : i32
    %c0_i32_1 = arith.constant 0 : i32
    return %arg0, %c0_i32, %c0_i32_0 : i32, i32, i32
  }
  func.func @transform_1(%arg0: i32) -> (i32, i32, i32) {
    %c0_i32 = arith.constant 0 : i32
    %c0_i32_0 = arith.constant 0 : i32
    %c0_i32_1 = arith.constant 0 : i32
    return %arg0, %c0_i32, %c0_i32_0 : i32, i32, i32
  }
  func.func @transform_2(%arg0: i32) -> (i32, i32) {
    %c0_i32 = arith.constant 0 : i32
    %c0_i32_0 = arith.constant 0 : i32
    %c0_i32_1 = arith.constant 0 : i32
    return %c0_i32, %c0_i32_0 : i32, i32
  }
  func.func @transform_3(%arg0: i32) -> (i32, i32) {
    %c0_i32 = arith.constant 0 : i32
    %c0_i32_0 = arith.constant 0 : i32
    %c0_i32_1 = arith.constant 0 : i32
    return %c0_i32, %c0_i32_0 : i32, i32
  }
  func.func @transform_4(%arg0: i32) -> (i32, i32) {
    %c0_i32 = arith.constant 0 : i32
    %c0_i32_0 = arith.constant 0 : i32
    %c0_i32_1 = arith.constant 0 : i32
    return %c0_i32, %c0_i32_0 : i32, i32
  }
  func.func @transform_5(%arg0: i32) -> (i32, i32) {
    %c0_i32 = arith.constant 0 : i32
    %c0_i32_0 = arith.constant 0 : i32
    %c0_i32_1 = arith.constant 0 : i32
    return %c0_i32, %c0_i32_0 : i32, i32
  }
  func.func @transform_6(%arg0: i32) -> (i32, i32, i32) {
    %c0_i32 = arith.constant 0 : i32
    %c0_i32_0 = arith.constant 0 : i32
    %c0_i32_1 = arith.constant 0 : i32
    return %arg0, %c0_i32, %c0_i32_0 : i32, i32, i32
  }
}

</mosaic_0001>

<llo_original>
// kernel: pixelwise_xcorr.1
$region0: #{pixelwise_xcorr.1}
  #allocation0 [shape = 'u32[]', space=smem, size = 0x4, offset = 0x4, fixed_abs, tag = 'smem constant byte address 0x4 - core index']
  #allocation1 [shape = 'u32[144,128]{1,0:T(1,128)}', space=vmem, size = 0x12000, scoped, tag = 'internal scratch']
  %s0 = inlined_call_operand.vmem [shape: f32[2,64,425], index: 0, kind: input, shape index: {}]
  %s1 = inlined_call_operand.vmem [shape: f32[2,64,256], index: 1, kind: input, shape index: {}]
  %s2 = inlined_call_operand.vmem [shape: bf16[425,256], index: 2, kind: input, shape index: {}]
  %s3 = inlined_call_operand.vmem [shape: f32[256,3], index: 3, kind: input, shape index: {}]
  %s4 = inlined_call_operand.vmem [shape: bf16[256,256], index: 4, kind: input, shape index: {}]
  %s5 = inlined_call_operand.vmem [shape: bf16[256,256], index: 5, kind: input, shape index: {}]
  %s6 = inlined_call_operand.vmem [shape: f32[2,256,256], index: 6, kind: output, shape index: {}]
  %s7 = sld [smem:[#allocation0]]
  $region57: #{pixelwise_xcorr.1} parent=0
    _
  %s9 = ssub.s32 1, %s7
  %s10 = scalar_select 0, %s9, %s7
  loop: start=0, step=1, limit=4
  $region2: #{pixelwise_xcorr.1} parent=0 // loop_pre_header
    _
  $region3: #{pixelwise_xcorr.1} parent=0 // loop_header
    %s12 = sphi 0, %s16
    %p13 = scmp.ge.s32.totalorder %s12, 4
    %s22 = sphi 0, %s24
    %s25 = sphi 0, %s22
    %s26 = sphi 0, %s25
    %s42 = sphi 0, %s26
    %s48 = sphi 0, %s50
    %s51 = sphi 0, %s48
    %s52 = sphi 0, %s51
    %s68 = sphi 0, %s52
    %s72 = sphi 0, %s72
    %s74 = sphi 0, %s72
    %s75 = sphi 0, %s74
    %s89 = sphi 0, %s75
    %s93 = sphi 0, %s93
    %s95 = sphi 0, %s93
    %s96 = sphi 0, %s95
    %s110 = sphi 0, %s96
    %s114 = sphi 0, %s114
    %s116 = sphi 0, %s114
    %s117 = sphi 0, %s116
    %s131 = sphi 0, %s117
    %s135 = sphi 0, %s135
    %s137 = sphi 0, %s135
    %s138 = sphi 0, %s137
    %s152 = sphi 0, %s138
    %s158 = sphi 0, %s160
    %s161 = sphi 0, %s158
    %s162 = sphi 0, %s161
    %s178 = sphi 0, %s162
  $region4: #{pixelwise_xcorr.1} parent=0 // loop_header_branch
    %15 = sbr.rel (%p13) target = $region8
  $region5: #{pixelwise_xcorr.1} parent=0 // loop_body
    %s17 = ssub.s32 %s12, 1
    %s18 = ssub.s32 %s12, 2
    %s19 = sadd.s32 %s12, 1
    %s20 = ssub.s32 %s12, %s19
    %p21 = scmp.eq.s32.totalorder %s20, 0
    %s23 = sadd.s32 %s22, 1
    %s24 = scalar_select %p21, %s22, %s23
    %p27 = pneg %p21
    %p28 = scmp.eq.s32.totalorder %s12, 1
    %p29 = por %p27, %p28
    %p30 = scmp.ne.s32.totalorder %s22, %s25
    %p31 = scmp.eq.s32.totalorder %s12, 0
    %p32 = por %p30, %p31
    %p33 = scmp.ne.s32.totalorder %s22, %s25
    %p34 = scmp.eq.s32.totalorder %s17, 1
    %p35 = por %p33, %p34
    %p36 = scmp.ne.s32.totalorder %s25, %s26
    %p37 = scmp.eq.s32.totalorder %s17, 0
    %p38 = por %p36, %p37
    %p39 = scmp.ne.s32.totalorder %s25, %s26
    %p40 = scmp.eq.s32.totalorder %s18, 1
    %p41 = por %p39, %p40
    %p43 = scmp.ne.s32.totalorder %s26, %s42
    %p44 = scmp.eq.s32.totalorder %s18, 0
    %p45 = por %p43, %p44
    %s46 = ssub.s32 %s12, %s19
    %p47 = scmp.eq.s32.totalorder %s46, 0
    %s49 = sadd.s32 %s48, 1
    %s50 = scalar_select %p47, %s48, %s49
    %p53 = pneg %p47
    %p54 = scmp.eq.s32.totalorder %s12, 1
    %p55 = por %p53, %p54
    %p56 = scmp.ne.s32.totalorder %s48, %s51
    %p57 = scmp.eq.s32.totalorder %s12, 0
    %p58 = por %p56, %p57
    %p59 = scmp.ne.s32.totalorder %s48, %s51
    %p60 = scmp.eq.s32.totalorder %s17, 1
    %p61 = por %p59, %p60
    %p62 = scmp.ne.s32.totalorder %s51, %s52
    %p63 = scmp.eq.s32.totalorder %s17, 0
    %p64 = por %p62, %p63
    %p65 = scmp.ne.s32.totalorder %s51, %s52
    %p66 = scmp.eq.s32.totalorder %s18, 1
    %p67 = por %p65, %p66
    %p69 = scmp.ne.s32.totalorder %s52, %s68
    %p70 = scmp.eq.s32.totalorder %s18, 0
    %p71 = por %p69, %p70
    %s73 = sadd.s32 %s72, 1
    %p76 = scmp.eq.s32.totalorder %s12, 1
    %p77 = scmp.ne.s32.totalorder %s72, %s74
    %p78 = scmp.eq.s32.totalorder %s12, 0
    %p79 = por %p77, %p78
    %p80 = scmp.ne.s32.totalorder %s72, %s74
    %p81 = scmp.eq.s32.totalorder %s17, 1
    %p82 = por %p80, %p81
    %p83 = scmp.ne.s32.totalorder %s74, %s75
    %p84 = scmp.eq.s32.totalorder %s17, 0
    %p85 = por %p83, %p84
    %p86 = scmp.ne.s32.totalorder %s74, %s75
    %p87 = scmp.eq.s32.totalorder %s18, 1
    %p88 = por %p86, %p87
    %p90 = scmp.ne.s32.totalorder %s75, %s89
    %p91 = scmp.eq.s32.totalorder %s18, 0
    %p92 = por %p90, %p91
    %s94 = sadd.s32 %s93, 1
    %p97 = scmp.eq.s32.totalorder %s12, 1
    %p98 = scmp.ne.s32.totalorder %s93, %s95
    %p99 = scmp.eq.s32.totalorder %s12, 0
    %p100 = por %p98, %p99
    %p101 = scmp.ne.s32.totalorder %s93, %s95
    %p102 = scmp.eq.s32.totalorder %s17, 1
    %p103 = por %p101, %p102
    %p104 = scmp.ne.s32.totalorder %s95, %s96
    %p105 = scmp.eq.s32.totalorder %s17, 0
    %p106 = por %p104, %p105
    %p107 = scmp.ne.s32.totalorder %s95, %s96
    %p108 = scmp.eq.s32.totalorder %s18, 1
    %p109 = por %p107, %p108
    %p111 = scmp.ne.s32.totalorder %s96, %s110
    %p112 = scmp.eq.s32.totalorder %s18, 0
    %p113 = por %p111, %p112
    %s115 = sadd.s32 %s114, 1
    %p118 = scmp.eq.s32.totalorder %s12, 1
    %p119 = scmp.ne.s32.totalorder %s114, %s116
    %p120 = scmp.eq.s32.totalorder %s12, 0
    %p121 = por %p119, %p120
    %p122 = scmp.ne.s32.totalorder %s114, %s116
    %p123 = scmp.eq.s32.totalorder %s17, 1
    %p124 = por %p122, %p123
    %p125 = scmp.ne.s32.totalorder %s116, %s117
    %p126 = scmp.eq.s32.totalorder %s17, 0
    %p127 = por %p125, %p126
    %p128 = scmp.ne.s32.totalorder %s116, %s117
    %p129 = scmp.eq.s32.totalorder %s18, 1
    %p130 = por %p128, %p129
    %p132 = scmp.ne.s32.totalorder %s117, %s131
    %p133 = scmp.eq.s32.totalorder %s18, 0
    %p134 = por %p132, %p133
    %s136 = sadd.s32 %s135, 1
    %p139 = scmp.eq.s32.totalorder %s12, 1
    %p140 = scmp.ne.s32.totalorder %s135, %s137
    %p141 = scmp.eq.s32.totalorder %s12, 0
    %p142 = por %p140, %p141
    %p143 = scmp.ne.s32.totalorder %s135, %s137
    %p144 = scmp.eq.s32.totalorder %s17, 1
    %p145 = por %p143, %p144
    %p146 = scmp.ne.s32.totalorder %s137, %s138
    %p147 = scmp.eq.s32.totalorder %s17, 0
    %p148 = por %p146, %p147
    %p149 = scmp.ne.s32.totalorder %s137, %s138
    %p150 = scmp.eq.s32.totalorder %s18, 1
    %p151 = por %p149, %p150
    %p153 = scmp.ne.s32.totalorder %s138, %s152
    %p154 = scmp.eq.s32.totalorder %s18, 0
    %p155 = por %p153, %p154
    %s156 = ssub.s32 %s12, %s19
    %p157 = scmp.eq.s32.totalorder %s156, 0
    %s159 = sadd.s32 %s158, 1
    %s160 = scalar_select %p157, %s158, %s159
    %p163 = pneg %p157
    %p164 = scmp.eq.s32.totalorder %s12, 1
    %p165 = por %p163, %p164
    %p166 = scmp.ne.s32.totalorder %s158, %s161
    %p167 = scmp.eq.s32.totalorder %s12, 0
    %p168 = por %p166, %p167
    %p169 = scmp.ne.s32.totalorder %s158, %s161
    %p170 = scmp.eq.s32.totalorder %s17, 1
    %p171 = por %p169, %p170
    %p172 = scmp.ne.s32.totalorder %s161, %s162
    %p173 = scmp.eq.s32.totalorder %s17, 0
    %p174 = por %p172, %p173
    %p175 = scmp.ne.s32.totalorder %s161, %s162
    %p176 = scmp.eq.s32.totalorder %s18, 1
    %p177 = por %p175, %p176
    %p179 = scmp.ne.s32.totalorder %s162, %s178
    %p180 = scmp.eq.s32.totalorder %s18, 0
    %p181 = por %p179, %p180
    %p182 = scmp.le.s32.totalorder 1, %s12
    %p183 = scmp.lt.s32.totalorder %s12, 3
    %p184 = pnand %p182, %p183
    %p185 = pneg %p184
    // Predicated region
    $region9: #{pixelwise_xcorr.1} parent=5 // pred_check
      _
    $region10: #{pixelwise_xcorr.1} parent=5 // pred_check_branch
      %187 = sbr.rel (%p184) target = $region12
    $region11: #{pixelwise_xcorr.1} parent=5 // pred_region
      %s188 = ssub.s32 %s12, 1
      // Predicated region
      $region13: #{pixelwise_xcorr.1} parent=11 // pred_check
        %p189 = pneg %p85
      $region14: #{pixelwise_xcorr.1} parent=11 // pred_check_branch
        %191 = sbr.rel (%p189) target = $region16
      $region15: #{pixelwise_xcorr.1} parent=11 // pred_region
        _
      $region16: #{pixelwise_xcorr.1} parent=11 // pred_fallthru
        _
      // Predicated region
      $region17: #{pixelwise_xcorr.1} parent=11 // pred_check
        %p192 = pneg %p106
      $region18: #{pixelwise_xcorr.1} parent=11 // pred_check_branch
        %194 = sbr.rel (%p192) target = $region20
      $region19: #{pixelwise_xcorr.1} parent=11 // pred_region
        _
      $region20: #{pixelwise_xcorr.1} parent=11 // pred_fallthru
        _
      // Predicated region
      $region21: #{pixelwise_xcorr.1} parent=11 // pred_check
        %p195 = pneg %p127
      $region22: #{pixelwise_xcorr.1} parent=11 // pred_check_branch
        %197 = sbr.rel (%p195) target = $region24
      $region23: #{pixelwise_xcorr.1} parent=11 // pred_region
        _
      $region24: #{pixelwise_xcorr.1} parent=11 // pred_fallthru
        _
      // Predicated region
      $region25: #{pixelwise_xcorr.1} parent=11 // pred_check
        %p198 = pneg %p148
      $region26: #{pixelwise_xcorr.1} parent=11 // pred_check_branch
        %200 = sbr.rel (%p198) target = $region28
      $region27: #{pixelwise_xcorr.1} parent=11 // pred_region
        _
      $region28: #{pixelwise_xcorr.1} parent=11 // pred_fallthru
        _
    $region12: #{pixelwise_xcorr.1} parent=5 // pred_fallthru
      _
    %p201 = scmp.lt.s32.totalorder %s12, 2
    // Predicated region
    $region29: #{pixelwise_xcorr.1} parent=5 // pred_check
      %p202 = pneg %p201
    $region30: #{pixelwise_xcorr.1} parent=5 // pred_check_branch
      %204 = sbr.rel (%p202) target = $region32
    $region31: #{pixelwise_xcorr.1} parent=5 // pred_region
      // Predicated region
      $region33: #{pixelwise_xcorr.1} parent=31 // pred_check
        %p205 = pneg %p32
      $region34: #{pixelwise_xcorr.1} parent=31 // pred_check_branch
        %207 = sbr.rel (%p205) target = $region36
      $region35: #{pixelwise_xcorr.1} parent=31 // pred_region
        %p208 = scmp.lt.s32.totalorder %s12, 1
        %s209 = scalar_select %p208, %s12, 1
        %s210 = smul.addr %s209, 32
        %s211 = smul.addr %s210, 8
        %s212 = scalar_lea.vmem %s0, %s211
      $region36: #{pixelwise_xcorr.1} parent=31 // pred_fallthru
        _
      // Predicated region
      $region37: #{pixelwise_xcorr.1} parent=31 // pred_check
        %p213 = pneg %p58
      $region38: #{pixelwise_xcorr.1} parent=31 // pred_check_branch
        %215 = sbr.rel (%p213) target = $region40
      $region39: #{pixelwise_xcorr.1} parent=31 // pred_region
        %p216 = scmp.lt.s32.totalorder %s12, 1
        %s217 = scalar_select %p216, %s12, 1
        %s218 = smul.addr %s217, 16
        %s219 = smul.addr %s218, 8
        %s220 = scalar_lea.vmem %s1, %s219
      $region40: #{pixelwise_xcorr.1} parent=31 // pred_fallthru
        _
    $region32: #{pixelwise_xcorr.1} parent=5 // pred_fallthru
      _
    %p221 = scmp.le.s32.totalorder 1, %s12
    %p222 = scmp.lt.s32.totalorder %s12, 3
    %p223 = pnand %p221, %p222
    %p224 = pneg %p223
    // Predicated region
    $region41: #{pixelwise_xcorr.1} parent=5 // pred_check
      _
    $region42: #{pixelwise_xcorr.1} parent=5 // pred_check_branch
      %226 = sbr.rel (%p223) target = $region44
    $region43: #{pixelwise_xcorr.1} parent=5 // pred_region
      %s227 = ssub.s32 %s12, 1
      %p228 = scmp.lt.s32.totalorder %s17, 1
      %s229 = scalar_select %p228, %s17, 1
      %s230 = smul.addr %s229, 32
      %s231 = smul.addr %s230, 8
      %s232 = scalar_lea.vmem %s0, %s231
      %p233 = pneg %p38
      %p234 = pneg %p35
      %p235 = scmp.lt.s32.totalorder %s17, 1
      %s236 = scalar_select %p235, %s17, 1
      %s237 = smul.addr %s236, 16
      %s238 = smul.addr %s237, 8
      %s239 = scalar_lea.vmem %s1, %s238
      %p240 = pneg %p64
      %p241 = pneg %p61
      %p242 = pneg %p85
      %p243 = pneg %p82
      %p244 = pneg %p106
      %p245 = pneg %p103
      %p246 = pneg %p127
      %p247 = pneg %p124
      %p248 = pneg %p148
      %p249 = pneg %p145
      %p250 = pneg %p174
      %p251 = pneg %p171
      %p252 = scmp.lt.s32.totalorder %s17, 1
      %s253 = scalar_select %p252, %s17, 1
      %s254 = smul.addr %s253, 64
      %s255 = smul.addr %s254, 8
      %s256 = scalar_lea.vmem %s6, %s255
      %p257 = scmp.lt.s32.totalorder %s17, 1
      %s258 = scalar_select %p257, %s17, 1
      %s259 = smul.addr %s258, 32
      %s260 = smul.addr %s259, 8
      %s261 = scalar_lea.vmem %s0, %s260
      %p262 = scmp.lt.s32.totalorder %s17, 1
      %s263 = scalar_select %p262, %s17, 1
      %s264 = smul.addr %s263, 16
      %s265 = smul.addr %s264, 8
      %s266 = scalar_lea.vmem %s1, %s265
      %p267 = scmp.lt.s32.totalorder %s17, 1
      %s268 = scalar_select %p267, %s17, 1
      %s269 = smul.addr %s268, 64
      %s270 = smul.addr %s269, 8
      %s271 = scalar_lea.vmem %s6, %s270
      %v273 = vld [vmem:[%s3] sm:$0xff]
      %v274 = vld [vmem:[%s3 + $0x8] sm:$0xff]
      %v275 = vld [vmem:[%s3 + $0x10] sm:$0xff]
      %v276 = vld [vmem:[%s3 + $0x18] sm:$0xff]
      %v277 = vld [vmem:[%s3 + $0x20] sm:$0xff]
      %v278 = vld [vmem:[%s3 + $0x28] sm:$0xff]
      %v279 = vld [vmem:[%s3 + $0x30] sm:$0xff]
      %v280 = vld [vmem:[%s3 + $0x38] sm:$0xff]
      %v281 = vld [vmem:[%s3 + $0x40] sm:$0xff]
      %v282 = vld [vmem:[%s3 + $0x48] sm:$0xff]
      %v283 = vld [vmem:[%s3 + $0x50] sm:$0xff]
      %v284 = vld [vmem:[%s3 + $0x58] sm:$0xff]
      %v285 = vld [vmem:[%s3 + $0x60] sm:$0xff]
      %v286 = vld [vmem:[%s3 + $0x68] sm:$0xff]
      %v287 = vld [vmem:[%s3 + $0x70] sm:$0xff]
      %v288 = vld [vmem:[%s3 + $0x78] sm:$0xff]
      %v289 = vld [vmem:[%s3 + $0x80] sm:$0xff]
      %v290 = vld [vmem:[%s3 + $0x88] sm:$0xff]
      %v291 = vld [vmem:[%s3 + $0x90] sm:$0xff]
      %v292 = vld [vmem:[%s3 + $0x98] sm:$0xff]
      %v293 = vld [vmem:[%s3 + $0xa0] sm:$0xff]
      %v294 = vld [vmem:[%s3 + $0xa8] sm:$0xff]
      %v295 = vld [vmem:[%s3 + $0xb0] sm:$0xff]
      %v296 = vld [vmem:[%s3 + $0xb8] sm:$0xff]
      %v297 = vld [vmem:[%s3 + $0xc0] sm:$0xff]
      %v298 = vld [vmem:[%s3 + $0xc8] sm:$0xff]
      %v299 = vld [vmem:[%s3 + $0xd0] sm:$0xff]
      %v300 = vld [vmem:[%s3 + $0xd8] sm:$0xff]
      %v301 = vld [vmem:[%s3 + $0xe0] sm:$0xff]
      %v302 = vld [vmem:[%s3 + $0xe8] sm:$0xff]
      %v303 = vld [vmem:[%s3 + $0xf0] sm:$0xff]
      %v304 = vld [vmem:[%s3 + $0xf8] sm:$0xff]
      %v305 = vld [vmem:[%s261] sm:$0xff]
      %v306 = vld [vmem:[%s261 + $0x8] sm:$0xff]
      %v307 = vld [vmem:[%s261 + $0x10] sm:$0xff]
      %v308 = vld [vmem:[%s261 + $0x18] sm:$0xff]
      %v309 = vld [vmem:[%s261 + $0x20] sm:$0xff]
      %v310 = vld [vmem:[%s261 + $0x28] sm:$0xff]
      %v311 = vld [vmem:[%s261 + $0x30] sm:$0xff]
      %v312 = vld [vmem:[%s261 + $0x38] sm:$0xff]
      %v313 = vld [vmem:[%s261 + $0x40] sm:$0xff]
      %v314 = vld [vmem:[%s261 + $0x48] sm:$0xff]
      %v315 = vld [vmem:[%s261 + $0x50] sm:$0xff]
      %v316 = vld [vmem:[%s261 + $0x58] sm:$0xff]
      %v317 = vld [vmem:[%s261 + $0x60] sm:$0xff]
      %v318 = vld [vmem:[%s261 + $0x68] sm:$0xff]
      %v319 = vld [vmem:[%s261 + $0x70] sm:$0xff]
      %v320 = vld [vmem:[%s261 + $0x78] sm:$0xff]
      %v321 = vld [vmem:[%s261 + $0x80] sm:$0xff]
      %v322 = vld [vmem:[%s261 + $0x88] sm:$0xff]
      %v323 = vld [vmem:[%s261 + $0x90] sm:$0xff]
      %v324 = vld [vmem:[%s261 + $0x98] sm:$0xff]
      %v325 = vld [vmem:[%s261 + $0xa0] sm:$0xff]
      %v326 = vld [vmem:[%s261 + $0xa8] sm:$0xff]
      %v327 = vld [vmem:[%s261 + $0xb0] sm:$0xff]
      %v328 = vld [vmem:[%s261 + $0xb8] sm:$0xff]
      %v329 = vld [vmem:[%s261 + $0xc0] sm:$0xff]
      %v330 = vld [vmem:[%s261 + $0xc8] sm:$0xff]
      %v331 = vld [vmem:[%s261 + $0xd0] sm:$0xff]
      %v332 = vld [vmem:[%s261 + $0xd8] sm:$0xff]
      %v333 = vld [vmem:[%s261 + $0xe0] sm:$0xff]
      %v334 = vld [vmem:[%s261 + $0xe8] sm:$0xff]
      %v335 = vld [vmem:[%s261 + $0xf0] sm:$0xff]
      %v336 = vld [vmem:[%s261 + $0xf8] sm:$0xff]
      %v337 = vpack.c.bf16 %v309, %v305
      %v338 = vpack.c.bf16 %v310, %v306
      %v339 = vpack.c.bf16 %v311, %v307
      %v340 = vpack.c.bf16 %v312, %v308
      %v341 = vpack.c.bf16 %v317, %v313
      %v342 = vpack.c.bf16 %v318, %v314
      %v343 = vpack.c.bf16 %v319, %v315
      %v344 = vpack.c.bf16 %v320, %v316
      %v345 = vpack.c.bf16 %v325, %v321
      %v346 = vpack.c.bf16 %v326, %v322
      %v347 = vpack.c.bf16 %v327, %v323
      %v348 = vpack.c.bf16 %v328, %v324
      %v349 = vpack.c.bf16 %v333, %v329
      %v350 = vpack.c.bf16 %v334, %v330
      %v351 = vpack.c.bf16 %v335, %v331
      %v352 = vpack.c.bf16 %v336, %v332
      %v353 = vld [vmem:[%s266] sm:$0xff]
      %v354 = vld [vmem:[%s266 + $0x8] sm:$0xff]
      %v355 = vld [vmem:[%s266 + $0x10] sm:$0xff]
      %v356 = vld [vmem:[%s266 + $0x18] sm:$0xff]
      %v357 = vld [vmem:[%s266 + $0x20] sm:$0xff]
      %v358 = vld [vmem:[%s266 + $0x28] sm:$0xff]
      %v359 = vld [vmem:[%s266 + $0x30] sm:$0xff]
      %v360 = vld [vmem:[%s266 + $0x38] sm:$0xff]
      %v361 = vld [vmem:[%s266 + $0x40] sm:$0xff]
      %v362 = vld [vmem:[%s266 + $0x48] sm:$0xff]
      %v363 = vld [vmem:[%s266 + $0x50] sm:$0xff]
      %v364 = vld [vmem:[%s266 + $0x58] sm:$0xff]
      %v365 = vld [vmem:[%s266 + $0x60] sm:$0xff]
      %v366 = vld [vmem:[%s266 + $0x68] sm:$0xff]
      %v367 = vld [vmem:[%s266 + $0x70] sm:$0xff]
      %v368 = vld [vmem:[%s266 + $0x78] sm:$0xff]
      %v369 = vld [vmem:[%s2] sm:$0xff]
      %v370 = vld [vmem:[%s2 + $0x8] sm:$0xff]
      %v371 = vld [vmem:[%s2 + $0x10] sm:$0xff]
      %v372 = vld [vmem:[%s2 + $0x18] sm:$0xff]
      %v373 = vld [vmem:[%s2 + $0x20] sm:$0xff]
      %v374 = vld [vmem:[%s2 + $0x28] sm:$0xff]
      %v375 = vld [vmem:[%s2 + $0x30] sm:$0xff]
      %v376 = vld [vmem:[%s2 + $0x38] sm:$0xff]
      %v377 = vld [vmem:[%s2 + $0x40] sm:$0xff]
      %v378 = vld [vmem:[%s2 + $0x48] sm:$0xff]
      %v379 = vld [vmem:[%s2 + $0x50] sm:$0xff]
      %v380 = vld [vmem:[%s2 + $0x58] sm:$0xff]
      %v381 = vld [vmem:[%s2 + $0x60] sm:$0xff]
      %v382 = vld [vmem:[%s2 + $0x68] sm:$0xff]
      %v383 = vld [vmem:[%s2 + $0x70] sm:$0xff]
      %v384 = vld [vmem:[%s2 + $0x78] sm:$0xff]
      %v385 = vld [vmem:[%s2 + $0x80] sm:$0xff]
      %v386 = vld [vmem:[%s2 + $0x88] sm:$0xff]
      %v387 = vld [vmem:[%s2 + $0x90] sm:$0xff]
      %v388 = vld [vmem:[%s2 + $0x98] sm:$0xff]
      %v389 = vld [vmem:[%s2 + $0xa0] sm:$0xff]
      %v390 = vld [vmem:[%s2 + $0xa8] sm:$0xff]
      %v391 = vld [vmem:[%s2 + $0xb0] sm:$0xff]
      %v392 = vld [vmem:[%s2 + $0xb8] sm:$0xff]
      %v393 = vld [vmem:[%s2 + $0xc0] sm:$0xff]
      %v394 = vld [vmem:[%s2 + $0xc8] sm:$0xff]
      %v395 = vld [vmem:[%s2 + $0xd0] sm:$0xff]
      %v396 = vld [vmem:[%s2 + $0xd8] sm:$0xff]
      %v397 = vld [vmem:[%s2 + $0xe0] sm:$0xff]
      %v398 = vld [vmem:[%s2 + $0xe8] sm:$0xff]
      %v399 = vld [vmem:[%s2 + $0xf0] sm:$0xff]
      %v400 = vld [vmem:[%s2 + $0xf8] sm:$0xff]
      %v401 = vld [vmem:[%s2 + $0x100] sm:$0xff]
      %v402 = vld [vmem:[%s2 + $0x108] sm:$0xff]
      %v403 = vld [vmem:[%s2 + $0x110] sm:$0xff]
      %v404 = vld [vmem:[%s2 + $0x118] sm:$0xff]
      %v405 = vld [vmem:[%s2 + $0x120] sm:$0xff]
      %v406 = vld [vmem:[%s2 + $0x128] sm:$0xff]
      %v407 = vld [vmem:[%s2 + $0x130] sm:$0xff]
      %v408 = vld [vmem:[%s2 + $0x138] sm:$0xff]
      %v409 = vld [vmem:[%s2 + $0x140] sm:$0xff]
      %v410 = vld [vmem:[%s2 + $0x148] sm:$0xff]
      %v411 = vld [vmem:[%s2 + $0x150] sm:$0xff]
      %v412 = vld [vmem:[%s2 + $0x158] sm:$0xff]
      %v413 = vld [vmem:[%s2 + $0x160] sm:$0xff]
      %v414 = vld [vmem:[%s2 + $0x168] sm:$0xff]
      %v415 = vld [vmem:[%s2 + $0x170] sm:$0xff]
      %v416 = vld [vmem:[%s2 + $0x178] sm:$0xff]
      %v417 = vld [vmem:[%s2 + $0x180] sm:$0xff]
      %v418 = vld [vmem:[%s2 + $0x188] sm:$0xff]
      %v419 = vld [vmem:[%s2 + $0x190] sm:$0xff]
      %v420 = vld [vmem:[%s2 + $0x198] sm:$0xff]
      %v421 = vld [vmem:[%s2 + $0x1a0] sm:$0xff]
      %v422 = vld [vmem:[%s2 + $0x1a8] sm:$0x11]
      %v477 = vunpack.c.l.b16 %v369
      %v478 = vunpack.c.h.b16 %v369
      %v479 = vunpack.c.l.b16 %v370
      %v480 = vunpack.c.h.b16 %v370
      %v481 = vunpack.c.l.b16 %v371
      %v482 = vunpack.c.h.b16 %v371
      %v483 = vunpack.c.l.b16 %v372
      %v484 = vunpack.c.h.b16 %v372
      %v485 = vunpack.c.l.b16 %v373
      %v486 = vunpack.c.h.b16 %v373
      %v487 = vunpack.c.l.b16 %v374
      %v488 = vunpack.c.h.b16 %v374
      %v489 = vunpack.c.l.b16 %v375
      %v490 = vunpack.c.h.b16 %v375
      %v491 = vunpack.c.l.b16 %v376
      %v492 = vunpack.c.h.b16 %v376
      %v493 = vunpack.c.l.b16 %v377
      %v494 = vunpack.c.h.b16 %v377
      %v495 = vunpack.c.l.b16 %v378
      %v496 = vunpack.c.h.b16 %v378
      %v497 = vunpack.c.l.b16 %v379
      %v498 = vunpack.c.h.b16 %v379
      %v499 = vunpack.c.l.b16 %v380
      %v500 = vunpack.c.h.b16 %v380
      %v501 = vunpack.c.l.b16 %v381
      %v502 = vunpack.c.h.b16 %v381
      %v503 = vunpack.c.l.b16 %v382
      %v504 = vunpack.c.h.b16 %v382
      %v505 = vunpack.c.l.b16 %v383
      %v506 = vunpack.c.h.b16 %v383
      %v507 = vunpack.c.l.b16 %v384
      %v508 = vunpack.c.h.b16 %v384
      %v509 = vunpack.c.l.b16 %v385
      %v510 = vunpack.c.h.b16 %v385
      %v511 = vunpack.c.l.b16 %v386
      %v512 = vunpack.c.h.b16 %v386
      %v513 = vunpack.c.l.b16 %v387
      %v514 = vunpack.c.h.b16 %v387
      %v515 = vunpack.c.l.b16 %v388
      %v516 = vunpack.c.h.b16 %v388
      %v517 = vunpack.c.l.b16 %v389
      %v518 = vunpack.c.h.b16 %v389
      %v519 = vunpack.c.l.b16 %v390
      %v520 = vunpack.c.h.b16 %v390
      %v521 = vunpack.c.l.b16 %v391
      %v522 = vunpack.c.h.b16 %v391
      %v523 = vunpack.c.l.b16 %v392
      %v524 = vunpack.c.h.b16 %v392
      %v525 = vunpack.c.l.b16 %v393
      %v526 = vunpack.c.h.b16 %v393
      %v527 = vunpack.c.l.b16 %v394
      %v528 = vunpack.c.h.b16 %v394
      %v529 = vunpack.c.l.b16 %v395
      %v530 = vunpack.c.h.b16 %v395
      %v531 = vunpack.c.l.b16 %v396
      %v532 = vunpack.c.h.b16 %v396
      %v533 = vunpack.c.l.b16 %v397
      %v534 = vunpack.c.h.b16 %v397
      %v535 = vunpack.c.l.b16 %v398
      %v536 = vunpack.c.h.b16 %v398
      %v537 = vunpack.c.l.b16 %v399
      %v538 = vunpack.c.h.b16 %v399
      %v539 = vunpack.c.l.b16 %v400
      %v540 = vunpack.c.h.b16 %v400
      %v541 = vunpack.c.l.b16 %v401
      %v542 = vunpack.c.h.b16 %v401
      %v543 = vunpack.c.l.b16 %v402
      %v544 = vunpack.c.h.b16 %v402
      %v545 = vunpack.c.l.b16 %v403
      %v546 = vunpack.c.h.b16 %v403
      %v547 = vunpack.c.l.b16 %v404
      %v548 = vunpack.c.h.b16 %v404
      %v549 = vunpack.c.l.b16 %v405
      %v550 = vunpack.c.h.b16 %v405
      %v551 = vunpack.c.l.b16 %v406
      %v552 = vunpack.c.h.b16 %v406
      %v553 = vunpack.c.l.b16 %v407
      %v554 = vunpack.c.h.b16 %v407
      %v555 = vunpack.c.l.b16 %v408
      %v556 = vunpack.c.h.b16 %v408
      %v557 = vunpack.c.l.b16 %v409
      %v558 = vunpack.c.h.b16 %v409
      %v559 = vunpack.c.l.b16 %v410
      %v560 = vunpack.c.h.b16 %v410
      %v561 = vunpack.c.l.b16 %v411
      %v562 = vunpack.c.h.b16 %v411
      %v563 = vunpack.c.l.b16 %v412
      %v564 = vunpack.c.h.b16 %v412
      %v565 = vunpack.c.l.b16 %v413
      %v566 = vunpack.c.h.b16 %v413
      %v567 = vunpack.c.l.b16 %v414
      %v568 = vunpack.c.h.b16 %v414
      %v569 = vunpack.c.l.b16 %v415
      %v570 = vunpack.c.h.b16 %v415
      %v571 = vunpack.c.l.b16 %v416
      %v572 = vunpack.c.h.b16 %v416
      %v573 = vunpack.c.l.b16 %v417
      %v574 = vunpack.c.h.b16 %v417
      %v575 = vunpack.c.l.b16 %v418
      %v576 = vunpack.c.h.b16 %v418
      %v577 = vunpack.c.l.b16 %v419
      %v578 = vunpack.c.h.b16 %v419
      %v579 = vunpack.c.l.b16 %v420
      %v580 = vunpack.c.h.b16 %v420
      %v581 = vunpack.c.l.b16 %v421
      %v582 = vunpack.c.h.b16 %v421
      %v583 = vunpack.c.l.b16 %v422
      %v584 = vunpack.c.h.b16 %v422
      %v585 = vpack.c.b16 %v479, %v477
      %v586 = vpack.c.b16 %v480, %v478
      %v587 = vpack.c.b16 %v483, %v481
      %v588 = vpack.c.b16 %v484, %v482
      %v589 = vpack.c.b16 %v487, %v485
      %v590 = vpack.c.b16 %v488, %v486
      %v591 = vpack.c.b16 %v491, %v489
      %v592 = vpack.c.b16 %v492, %v490
      %v593 = vpack.c.b16 %v495, %v493
      %v594 = vpack.c.b16 %v496, %v494
      %v595 = vpack.c.b16 %v499, %v497
      %v596 = vpack.c.b16 %v500, %v498
      %v597 = vpack.c.b16 %v503, %v501
      %v598 = vpack.c.b16 %v504, %v502
      %v599 = vpack.c.b16 %v507, %v505
      %v600 = vpack.c.b16 %v508, %v506
      %v601 = vpack.c.b16 %v511, %v509
      %v602 = vpack.c.b16 %v512, %v510
      %v603 = vpack.c.b16 %v515, %v513
      %v604 = vpack.c.b16 %v516, %v514
      %v605 = vpack.c.b16 %v519, %v517
      %v606 = vpack.c.b16 %v520, %v518
      %v607 = vpack.c.b16 %v523, %v521
      %v608 = vpack.c.b16 %v524, %v522
      %v609 = vpack.c.b16 %v527, %v525
      %v610 = vpack.c.b16 %v528, %v526
      %v611 = vpack.c.b16 %v531, %v529
      %v612 = vpack.c.b16 %v532, %v530
      %v613 = vpack.c.b16 %v535, %v533
      %v614 = vpack.c.b16 %v536, %v534
      %v615 = vpack.c.b16 %v539, %v537
      %v616 = vpack.c.b16 %v540, %v538
      %v617 = vpack.c.b16 %v543, %v541
      %v618 = vpack.c.b16 %v544, %v542
      %v619 = vpack.c.b16 %v547, %v545
      %v620 = vpack.c.b16 %v548, %v546
      %v621 = vpack.c.b16 %v551, %v549
      %v622 = vpack.c.b16 %v552, %v550
      %v623 = vpack.c.b16 %v555, %v553
      %v624 = vpack.c.b16 %v556, %v554
      %v625 = vpack.c.b16 %v559, %v557
      %v626 = vpack.c.b16 %v560, %v558
      %v627 = vpack.c.b16 %v563, %v561
      %v628 = vpack.c.b16 %v564, %v562
      %v629 = vpack.c.b16 %v567, %v565
      %v630 = vpack.c.b16 %v568, %v566
      %v631 = vpack.c.b16 %v571, %v569
      %v632 = vpack.c.b16 %v572, %v570
      %v633 = vpack.c.b16 %v575, %v573
      %v634 = vpack.c.b16 %v576, %v574
      %v635 = vpack.c.b16 %v579, %v577
      %v636 = vpack.c.b16 %v580, %v578
      %v637 = vpack.c.b16 %v583, %v581
      %v638 = vpack.c.b16 %v584, %v582
      %vm691 = vcmask 334848
      %v693 = vsel %vm691, %v340, 0
      %v696 = vsel %vm691, %v344, 0
      %v699 = vsel %vm691, %v348, 0
      %v702 = vsel %vm691, %v352, 0
      %vm704 = vcmask 1043456
      %vm705 = vcmask 1044480
      %v706 = vsel %vm704, 4294967295, 65535
      %v707 = vsel %vm705, %v706, 0
      %v709 = vand.u32 %v637, %v707
      %v712 = vand.u32 %v638, %v707
      %714 = vmatprep.subr.bf16.mxu0 %v586
      %715 = vmatpush1.bf16.msra.mxu0 %v585
      %716 = vmatprep.subr.bf16.mxu0 %v588
      %717 = vmatpush1.bf16.msra.mxu0 %v587
      %718 = vmatprep.subr.bf16.mxu0 %v590
      %719 = vmatpush1.bf16.msra.mxu0 %v589
      %720 = vmatprep.subr.bf16.mxu0 %v592
      %721 = vmatpush1.bf16.msra.mxu0 %v591
      %722 = vmatprep.subr.bf16.mxu0 %v594
      %723 = vmatpush1.bf16.msra.mxu0 %v593
      %724 = vmatprep.subr.bf16.mxu0 %v596
      %725 = vmatpush1.bf16.msra.mxu0 %v595
      %726 = vmatprep.subr.bf16.mxu0 %v598
      %727 = vmatpush1.bf16.msra.mxu0 %v597
      %728 = vmatprep.subr.bf16.mxu0 %v600
      %729 = vmatpush1.bf16.msra.mxu0 %v599
      %730 = vmatprep.subr.bf16.mxu0 %v602
      %731 = vmatpush1.bf16.msra.mxu0 %v601
      %732 = vmatprep.subr.bf16.mxu0 %v604
      %733 = vmatpush1.bf16.msra.mxu0 %v603
      %734 = vmatprep.subr.bf16.mxu0 %v606
      %735 = vmatpush1.bf16.msra.mxu0 %v605
      %736 = vmatprep.subr.bf16.mxu0 %v608
      %737 = vmatpush1.bf16.msra.mxu0 %v607
      %738 = vmatprep.subr.bf16.mxu0 %v610
      %739 = vmatpush1.bf16.msra.mxu0 %v609
      %740 = vmatprep.subr.bf16.mxu0 %v612
      %741 = vmatpush1.bf16.msra.mxu0 %v611
      %742 = vmatprep.subr.bf16.mxu0 %v614
      %743 = vmatpush1.bf16.msra.mxu0 %v613
      %744 = vmatprep.subr.bf16.mxu0 %v616
      %745 = vmatpush1.bf16.msra.mxu0 %v615
      %746 = vmatprep.mubr.bf16.mxu0 %v338
      %747 = vmatmul.mubr.bf16.gmra.mrb[0].mxu0 %v337
      %v748 = vpop.f32.mrb[0].mxu0
      %v749 = vadd.f32 0.0, %v748
      %v750 = vpop.f32.mrb[0].mxu0
      %v751 = vadd.f32 0.0, %v750
      %v752 = vpop.f32.mrb[0].mxu0
      %v753 = vadd.f32 0.0, %v752
      %v754 = vpop.f32.mrb[0].mxu0
      %v755 = vadd.f32 0.0, %v754
      %756 = vmatprep.mubr.bf16.mxu0 %v342
      %757 = vmatmul.mubr.bf16.gmra.mrb[0].mxu0 %v341
      %v758 = vpop.f32.mrb[0].mxu0
      %v759 = vadd.f32 0.0, %v758
      %v760 = vpop.f32.mrb[0].mxu0
      %v761 = vadd.f32 0.0, %v760
      %v762 = vpop.f32.mrb[0].mxu0
      %v763 = vadd.f32 0.0, %v762
      %v764 = vpop.f32.mrb[0].mxu0
      %v765 = vadd.f32 0.0, %v764
      %766 = vmatprep.mubr.bf16.mxu0 %v346
      %767 = vmatmul.mubr.bf16.gmra.mrb[0].mxu0 %v345
      %v768 = vpop.f32.mrb[0].mxu0
      %v769 = vadd.f32 0.0, %v768
      %v770 = vpop.f32.mrb[0].mxu0
      %v771 = vadd.f32 0.0, %v770
      %v772 = vpop.f32.mrb[0].mxu0
      %v773 = vadd.f32 0.0, %v772
      %v774 = vpop.f32.mrb[0].mxu0
      %v775 = vadd.f32 0.0, %v774
      %776 = vmatprep.mubr.bf16.mxu0 %v350
      %777 = vmatmul.mubr.bf16.gmra.mrb[0].mxu0 %v349
      %v778 = vpop.f32.mrb[0].mxu0
      %v779 = vadd.f32 0.0, %v778
      %v780 = vpop.f32.mrb[0].mxu0
      %v781 = vadd.f32 0.0, %v780
      %v782 = vpop.f32.mrb[0].mxu0
      %v783 = vadd.f32 0.0, %v782
      %v784 = vpop.f32.mrb[0].mxu0
      %v785 = vadd.f32 0.0, %v784
      %786 = vdwg.mxu0
      %787 = vmatprep.subr.bf16.mxu0 %v618
      %788 = vmatpush1.bf16.msra.mxu0 %v617
      %789 = vmatprep.subr.bf16.mxu0 %v620
      %790 = vmatpush1.bf16.msra.mxu0 %v619
      %791 = vmatprep.subr.bf16.mxu0 %v622
      %792 = vmatpush1.bf16.msra.mxu0 %v621
      %793 = vmatprep.subr.bf16.mxu0 %v624
      %794 = vmatpush1.bf16.msra.mxu0 %v623
      %795 = vmatprep.subr.bf16.mxu0 %v626
      %796 = vmatpush1.bf16.msra.mxu0 %v625
      %797 = vmatprep.subr.bf16.mxu0 %v628
      %798 = vmatpush1.bf16.msra.mxu0 %v627
      %799 = vmatprep.subr.bf16.mxu0 %v630
      %800 = vmatpush1.bf16.msra.mxu0 %v629
      %801 = vmatprep.subr.bf16.mxu0 %v632
      %802 = vmatpush1.bf16.msra.mxu0 %v631
      %803 = vmatprep.subr.bf16.mxu0 %v634
      %804 = vmatpush1.bf16.msra.mxu0 %v633
      %805 = vmatprep.subr.bf16.mxu0 %v636
      %806 = vmatpush1.bf16.msra.mxu0 %v635
      %807 = vmatprep.subr.bf16.mxu0 %v712
      %808 = vmatpush1.bf16.msra.mxu0 %v709
      %809 = vmatprep.subr.bf16.mxu0 0
      %810 = vmatpush1.bf16.msra.mxu0 0
      %811 = vmatprep.subr.bf16.mxu0 0
      %812 = vmatpush1.bf16.msra.mxu0 0
      %813 = vmatprep.subr.bf16.mxu0 0
      %814 = vmatpush1.bf16.msra.mxu0 0
      %815 = vmatprep.subr.bf16.mxu0 0
      %816 = vmatpush1.bf16.msra.mxu0 0
      %817 = vmatprep.subr.bf16.mxu0 0
      %818 = vmatpush1.bf16.msra.mxu0 0
      %819 = vmatprep.mubr.bf16.mxu0 %v693
      %820 = vmatmul.mubr.bf16.gmra.mrb[0].mxu0 %v339
      %v821 = vpop.f32.mrb[0].mxu0
      %v822 = vadd.f32 %v749, %v821
      %v823 = vpop.f32.mrb[0].mxu0
      %v824 = vadd.f32 %v751, %v823
      %v825 = vpop.f32.mrb[0].mxu0
      %v826 = vadd.f32 %v753, %v825
      %v827 = vpop.f32.mrb[0].mxu0
      %v828 = vadd.f32 %v755, %v827
      %829 = vmatprep.mubr.bf16.mxu0 %v696
      %830 = vmatmul.mubr.bf16.gmra.mrb[0].mxu0 %v343
      %v831 = vpop.f32.mrb[0].mxu0
      %v832 = vadd.f32 %v759, %v831
      %v833 = vpop.f32.mrb[0].mxu0
      %v834 = vadd.f32 %v761, %v833
      %v835 = vpop.f32.mrb[0].mxu0
      %v836 = vadd.f32 %v763, %v835
      %v837 = vpop.f32.mrb[0].mxu0
      %v838 = vadd.f32 %v765, %v837
      %839 = vmatprep.mubr.bf16.mxu0 %v699
      %840 = vmatmul.mubr.bf16.gmra.mrb[0].mxu0 %v347
      %v841 = vpop.f32.mrb[0].mxu0
      %v842 = vadd.f32 %v769, %v841
      %v843 = vpop.f32.mrb[0].mxu0
      %v844 = vadd.f32 %v771, %v843
      %v845 = vpop.f32.mrb[0].mxu0
      %v846 = vadd.f32 %v773, %v845
      %v847 = vpop.f32.mrb[0].mxu0
      %v848 = vadd.f32 %v775, %v847
      %849 = vmatprep.mubr.bf16.mxu0 %v702
      %850 = vmatmul.mubr.bf16.gmra.mrb[0].mxu0 %v351
      %v851 = vpop.f32.mrb[0].mxu0
      %v852 = vadd.f32 %v779, %v851
      %v853 = vpop.f32.mrb[0].mxu0
      %v854 = vadd.f32 %v781, %v853
      %v855 = vpop.f32.mrb[0].mxu0
      %v856 = vadd.f32 %v783, %v855
      %v857 = vpop.f32.mrb[0].mxu0
      %v858 = vadd.f32 %v785, %v857
      %859 = vdwg.mxu0
      %861 = vset.pattern.permute.xlu0 0
      %862 = vperm.xlu0 %861, %v273
      %v863 = vpop.permute.xlu0 %862
      %866 = vset.pattern.permute.xlu0 0
      %867 = vperm.xlu0 %866, %v274
      %v868 = vpop.permute.xlu0 %867
      %871 = vset.pattern.permute.xlu0 0
      %872 = vperm.xlu0 %871, %v275
      %v873 = vpop.permute.xlu0 %872
      %876 = vset.pattern.permute.xlu0 0
      %877 = vperm.xlu0 %876, %v276
      %v878 = vpop.permute.xlu0 %877
      %881 = vset.pattern.permute.xlu0 0
      %882 = vperm.xlu0 %881, %v277
      %v883 = vpop.permute.xlu0 %882
      %886 = vset.pattern.permute.xlu0 0
      %887 = vperm.xlu0 %886, %v278
      %v888 = vpop.permute.xlu0 %887
      %891 = vset.pattern.permute.xlu0 0
      %892 = vperm.xlu0 %891, %v279
      %v893 = vpop.permute.xlu0 %892
      %896 = vset.pattern.permute.xlu0 0
      %897 = vperm.xlu0 %896, %v280
      %v898 = vpop.permute.xlu0 %897
      %901 = vset.pattern.permute.xlu0 0
      %902 = vperm.xlu0 %901, %v281
      %v903 = vpop.permute.xlu0 %902
      %906 = vset.pattern.permute.xlu0 0
      %907 = vperm.xlu0 %906, %v282
      %v908 = vpop.permute.xlu0 %907
      %911 = vset.pattern.permute.xlu0 0
      %912 = vperm.xlu0 %911, %v283
      %v913 = vpop.permute.xlu0 %912
      %916 = vset.pattern.permute.xlu0 0
      %917 = vperm.xlu0 %916, %v284
      %v918 = vpop.permute.xlu0 %917
      %921 = vset.pattern.permute.xlu0 0
      %922 = vperm.xlu0 %921, %v285
      %v923 = vpop.permute.xlu0 %922
      %926 = vset.pattern.permute.xlu0 0
      %927 = vperm.xlu0 %926, %v286
      %v928 = vpop.permute.xlu0 %927
      %931 = vset.pattern.permute.xlu0 0
      %932 = vperm.xlu0 %931, %v287
      %v933 = vpop.permute.xlu0 %932
      %936 = vset.pattern.permute.xlu0 0
      %937 = vperm.xlu0 %936, %v288
      %v938 = vpop.permute.xlu0 %937
      %941 = vset.pattern.permute.xlu0 0
      %942 = vperm.xlu0 %941, %v289
      %v943 = vpop.permute.xlu0 %942
      %946 = vset.pattern.permute.xlu0 0
      %947 = vperm.xlu0 %946, %v290
      %v948 = vpop.permute.xlu0 %947
      %951 = vset.pattern.permute.xlu0 0
      %952 = vperm.xlu0 %951, %v291
      %v953 = vpop.permute.xlu0 %952
      %956 = vset.pattern.permute.xlu0 0
      %957 = vperm.xlu0 %956, %v292
      %v958 = vpop.permute.xlu0 %957
      %961 = vset.pattern.permute.xlu0 0
      %962 = vperm.xlu0 %961, %v293
      %v963 = vpop.permute.xlu0 %962
      %966 = vset.pattern.permute.xlu0 0
      %967 = vperm.xlu0 %966, %v294
      %v968 = vpop.permute.xlu0 %967
      %971 = vset.pattern.permute.xlu0 0
      %972 = vperm.xlu0 %971, %v295
      %v973 = vpop.permute.xlu0 %972
      %976 = vset.pattern.permute.xlu0 0
      %977 = vperm.xlu0 %976, %v296
      %v978 = vpop.permute.xlu0 %977
      %981 = vset.pattern.permute.xlu0 0
      %982 = vperm.xlu0 %981, %v297
      %v983 = vpop.permute.xlu0 %982
      %986 = vset.pattern.permute.xlu0 0
      %987 = vperm.xlu0 %986, %v298
      %v988 = vpop.permute.xlu0 %987
      %991 = vset.pattern.permute.xlu0 0
      %992 = vperm.xlu0 %991, %v299
      %v993 = vpop.permute.xlu0 %992
      %996 = vset.pattern.permute.xlu0 0
      %997 = vperm.xlu0 %996, %v300
      %v998 = vpop.permute.xlu0 %997
      %1001 = vset.pattern.permute.xlu0 0
      %1002 = vperm.xlu0 %1001, %v301
      %v1003 = vpop.permute.xlu0 %1002
      %1006 = vset.pattern.permute.xlu0 0
      %1007 = vperm.xlu0 %1006, %v302
      %v1008 = vpop.permute.xlu0 %1007
      %1011 = vset.pattern.permute.xlu0 0
      %1012 = vperm.xlu0 %1011, %v303
      %v1013 = vpop.permute.xlu0 %1012
      %1016 = vset.pattern.permute.xlu0 0
      %1017 = vperm.xlu0 %1016, %v304
      %v1018 = vpop.permute.xlu0 %1017
      %1020 = vxpose.xlu0.b32.start [1/16] %v822, 128
      %1021 = vxpose.xlu0.b32.cont [2/16] %v826, 128
      %1022 = vxpose.xlu0.b32.cont [3/16] %v832, 128
      %1023 = vxpose.xlu0.b32.cont [4/16] %v836, 128
      %1024 = vxpose.xlu0.b32.cont [5/16] %v842, 128
      %1025 = vxpose.xlu0.b32.cont [6/16] %v846, 128
      %1026 = vxpose.xlu0.b32.cont [7/16] %v852, 128
      %1027 = vxpose.xlu0.b32.cont [8/16] %v856, 128
      %1028 = vxpose.xlu0.b32.cont [9/16] 0.0, 128
      %1029 = vxpose.xlu0.b32.cont [10/16] 0.0, 128
      %1030 = vxpose.xlu0.b32.cont [11/16] 0.0, 128
      %1031 = vxpose.xlu0.b32.cont [12/16] 0.0, 128
      %1032 = vxpose.xlu0.b32.cont [13/16] 0.0, 128
      %1033 = vxpose.xlu0.b32.cont [14/16] 0.0, 128
      %1034 = vxpose.xlu0.b32.cont [15/16] 0.0, 128
      %1035 = vxpose.xlu0.b32.end [16/16] 0.0, 128
      %v1036 = vpop.trf.xlu0
      %v1037 = vpop.trf.xlu0
      %v1038 = vpop.trf.xlu0
      %v1039 = vpop.trf.xlu0
      %v1040 = vpop.trf.xlu0
      %v1041 = vpop.trf.xlu0
      %v1042 = vpop.trf.xlu0
      %v1043 = vpop.trf.xlu0
      %v1044 = vpop.trf.xlu0
      %v1045 = vpop.trf.xlu0
      %v1046 = vpop.trf.xlu0
      %v1047 = vpop.trf.xlu0
      %v1048 = vpop.trf.xlu0
      %v1049 = vpop.trf.xlu0
      %v1050 = vpop.trf.xlu0
      %v1051 = vpop.trf.xlu0
      %1052 = vxpose.xlu0.b32.start [1/16] %v824, 128
      %1053 = vxpose.xlu0.b32.cont [2/16] %v828, 128
      %1054 = vxpose.xlu0.b32.cont [3/16] %v834, 128
      %1055 = vxpose.xlu0.b32.cont [4/16] %v838, 128
      %1056 = vxpose.xlu0.b32.cont [5/16] %v844, 128
      %1057 = vxpose.xlu0.b32.cont [6/16] %v848, 128
      %1058 = vxpose.xlu0.b32.cont [7/16] %v854, 128
      %1059 = vxpose.xlu0.b32.cont [8/16] %v858, 128
      %1060 = vxpose.xlu0.b32.cont [9/16] 0.0, 128
      %1061 = vxpose.xlu0.b32.cont [10/16] 0.0, 128
      %1062 = vxpose.xlu0.b32.cont [11/16] 0.0, 128
      %1063 = vxpose.xlu0.b32.cont [12/16] 0.0, 128
      %1064 = vxpose.xlu0.b32.cont [13/16] 0.0, 128
      %1065 = vxpose.xlu0.b32.cont [14/16] 0.0, 128
      %1066 = vxpose.xlu0.b32.cont [15/16] 0.0, 128
      %1067 = vxpose.xlu0.b32.end [16/16] 0.0, 128
      %v1068 = vpop.trf.xlu0
      %v1069 = vpop.trf.xlu0
      %v1070 = vpop.trf.xlu0
      %v1071 = vpop.trf.xlu0
      %v1072 = vpop.trf.xlu0
      %v1073 = vpop.trf.xlu0
      %v1074 = vpop.trf.xlu0
      %v1075 = vpop.trf.xlu0
      %v1076 = vpop.trf.xlu0
      %v1077 = vpop.trf.xlu0
      %v1078 = vpop.trf.xlu0
      %v1079 = vpop.trf.xlu0
      %v1080 = vpop.trf.xlu0
      %v1081 = vpop.trf.xlu0
      %v1082 = vpop.trf.xlu0
      %v1083 = vpop.trf.xlu0
      %vm1084 = vcmask 523264
      %v1086 = vsel %vm1084, %v1036, 0
      %v1089 = vsel %vm1084, %v1037, 0
      %v1092 = vsel %vm1084, %v1038, 0
      %v1095 = vsel %vm1084, %v1039, 0
      %v1098 = vsel %vm1084, %v1040, 0
      %v1101 = vsel %vm1084, %v1041, 0
      %v1104 = vsel %vm1084, %v1042, 0
      %v1107 = vsel %vm1084, %v1043, 0
      %v1110 = vsel %vm1084, %v1044, 0
      %v1113 = vsel %vm1084, %v1045, 0
      %v1116 = vsel %vm1084, %v1046, 0
      %v1119 = vsel %vm1084, %v1047, 0
      %v1122 = vsel %vm1084, %v1048, 0
      %v1125 = vsel %vm1084, %v1049, 0
      %v1128 = vsel %vm1084, %v1050, 0
      %v1131 = vsel %vm1084, %v1051, 0
      %v1134 = vsel %vm1084, %v1068, 0
      %v1137 = vsel %vm1084, %v1069, 0
      %v1140 = vsel %vm1084, %v1070, 0
      %v1143 = vsel %vm1084, %v1071, 0
      %v1146 = vsel %vm1084, %v1072, 0
      %v1149 = vsel %vm1084, %v1073, 0
      %v1152 = vsel %vm1084, %v1074, 0
      %v1155 = vsel %vm1084, %v1075, 0
      %v1158 = vsel %vm1084, %v1076, 0
      %v1161 = vsel %vm1084, %v1077, 0
      %v1164 = vsel %vm1084, %v1078, 0
      %v1167 = vsel %vm1084, %v1079, 0
      %v1170 = vsel %vm1084, %v1080, 0
      %v1173 = vsel %vm1084, %v1081, 0
      %v1176 = vsel %vm1084, %v1082, 0
      %v1179 = vsel %vm1084, %v1083, 0
      %1181 = vmatprep.subr.mxu0 %v354
      %1182 = vmatpush1.msra.mxu0 %v353
      %1183 = vmatprep.subr.mxu0 %v356
      %1184 = vmatpush1.msra.mxu0 %v355
      %1185 = vmatprep.subr.mxu0 %v358
      %1186 = vmatpush1.msra.mxu0 %v357
      %1187 = vmatprep.subr.mxu0 %v360
      %1188 = vmatpush1.msra.mxu0 %v359
      %1189 = vmatprep.subr.mxu0 %v362
      %1190 = vmatpush1.msra.mxu0 %v361
      %1191 = vmatprep.subr.mxu0 %v364
      %1192 = vmatpush1.msra.mxu0 %v363
      %1193 = vmatprep.subr.mxu0 %v366
      %1194 = vmatpush1.msra.mxu0 %v365
      %1195 = vmatprep.subr.mxu0 %v368
      %1196 = vmatpush1.msra.mxu0 %v367
      %1197 = vmatprep.subr.mxu0 0.0
      %1198 = vmatpush1.msra.mxu0 0.0
      %1199 = vmatprep.subr.mxu0 0.0
      %1200 = vmatpush1.msra.mxu0 0.0
      %1201 = vmatprep.subr.mxu0 0.0
      %1202 = vmatpush1.msra.mxu0 0.0
      %1203 = vmatprep.subr.mxu0 0.0
      %1204 = vmatpush1.msra.mxu0 0.0
      %1205 = vmatprep.subr.mxu0 0.0
      %1206 = vmatpush1.msra.mxu0 0.0
      %1207 = vmatprep.subr.mxu0 0.0
      %1208 = vmatpush1.msra.mxu0 0.0
      %1209 = vmatprep.subr.mxu0 0.0
      %1210 = vmatpush1.msra.mxu0 0.0
      %1211 = vmatprep.subr.mxu0 0.0
      %1212 = vmatpush1.msra.mxu0 0.0
      %1213 = vmatprep.subr.mxu0 0.0
      %1214 = vmatpush1.msra.mxu0 0.0
      %1215 = vmatprep.subr.mxu0 0.0
      %1216 = vmatpush1.msra.mxu0 0.0
      %1217 = vmatprep.subr.mxu0 0.0
      %1218 = vmatpush1.msra.mxu0 0.0
      %1219 = vmatprep.subr.mxu0 0.0
      %1220 = vmatpush1.msra.mxu0 0.0
      %1221 = vmatprep.subr.mxu0 0.0
      %1222 = vmatpush1.msra.mxu0 0.0
      %1223 = vmatprep.subr.mxu0 0.0
      %1224 = vmatpush1.msra.mxu0 0.0
      %1225 = vmatprep.subr.mxu0 0.0
      %1226 = vmatpush1.msra.mxu0 0.0
      %1227 = vmatprep.subr.mxu0 0.0
      %1228 = vmatpush1.msra.mxu0 0.0
      %1229 = vmatprep.subr.mxu0 0.0
      %1230 = vmatpush1.msra.mxu0 0.0
      %1231 = vmatprep.subr.mxu0 0.0
      %1232 = vmatpush1.msra.mxu0 0.0
      %1233 = vmatprep.subr.mxu0 0.0
      %1234 = vmatpush1.msra.mxu0 0.0
      %1235 = vmatprep.subr.mxu0 0.0
      %1236 = vmatpush1.msra.mxu0 0.0
      %1237 = vmatprep.subr.mxu0 0.0
      %1238 = vmatpush1.msra.mxu0 0.0
      %1239 = vmatprep.subr.mxu0 0.0
      %1240 = vmatpush1.msra.mxu0 0.0
      %1241 = vmatprep.subr.mxu0 0.0
      %1242 = vmatpush1.msra.mxu0 0.0
      %1243 = vmatprep.subr.mxu0 0.0
      %1244 = vmatpush1.msra.mxu0 0.0
      %1245 = vmatprep.mubr.f32.mxu0 0.0
      %1246 = vmatmul.mubr.f32.gmra.mrb[0].mxu0 %v1086
      %v1247 = vpop.f32.mrb[0].mxu0
      %v1248 = vadd.f32 %v863, %v1247
      %v1249 = vpop.f32.mrb[0].mxu0
      %v1250 = vadd.f32 %v863, %v1249
      %1251 = vmatprep.mubr.f32.mxu0 0.0
      %1252 = vmatmul.mubr.f32.gmra.mrb[0].mxu0 %v1089
      %v1253 = vpop.f32.mrb[0].mxu0
      %v1254 = vadd.f32 %v868, %v1253
      %v1255 = vpop.f32.mrb[0].mxu0
      %v1256 = vadd.f32 %v868, %v1255
      %1257 = vmatprep.mubr.f32.mxu0 0.0
      %1258 = vmatmul.mubr.f32.gmra.mrb[0].mxu0 %v1092
      %v1259 = vpop.f32.mrb[0].mxu0
      %v1260 = vadd.f32 %v873, %v1259
      %v1261 = vpop.f32.mrb[0].mxu0
      %v1262 = vadd.f32 %v873, %v1261
      %1263 = vmatprep.mubr.f32.mxu0 0.0
      %1264 = vmatmul.mubr.f32.gmra.mrb[0].mxu0 %v1095
      %v1265 = vpop.f32.mrb[0].mxu0
      %v1266 = vadd.f32 %v878, %v1265
      %v1267 = vpop.f32.mrb[0].mxu0
      %v1268 = vadd.f32 %v878, %v1267
      %1269 = vmatprep.mubr.f32.mxu0 0.0
      %1270 = vmatmul.mubr.f32.gmra.mrb[0].mxu0 %v1098
      %v1271 = vpop.f32.mrb[0].mxu0
      %v1272 = vadd.f32 %v883, %v1271
      %v1273 = vpop.f32.mrb[0].mxu0
      %v1274 = vadd.f32 %v883, %v1273
      %1275 = vmatprep.mubr.f32.mxu0 0.0
      %1276 = vmatmul.mubr.f32.gmra.mrb[0].mxu0 %v1101
      %v1277 = vpop.f32.mrb[0].mxu0
      %v1278 = vadd.f32 %v888, %v1277
      %v1279 = vpop.f32.mrb[0].mxu0
      %v1280 = vadd.f32 %v888, %v1279
      %1281 = vmatprep.mubr.f32.mxu0 0.0
      %1282 = vmatmul.mubr.f32.gmra.mrb[0].mxu0 %v1104
      %v1283 = vpop.f32.mrb[0].mxu0
      %v1284 = vadd.f32 %v893, %v1283
      %v1285 = vpop.f32.mrb[0].mxu0
      %v1286 = vadd.f32 %v893, %v1285
      %1287 = vmatprep.mubr.f32.mxu0 0.0
      %1288 = vmatmul.mubr.f32.gmra.mrb[0].mxu0 %v1107
      %v1289 = vpop.f32.mrb[0].mxu0
      %v1290 = vadd.f32 %v898, %v1289
      %v1291 = vpop.f32.mrb[0].mxu0
      %v1292 = vadd.f32 %v898, %v1291
      %1293 = vmatprep.mubr.f32.mxu0 0.0
      %1294 = vmatmul.mubr.f32.gmra.mrb[0].mxu0 %v1110
      %v1295 = vpop.f32.mrb[0].mxu0
      %v1296 = vadd.f32 %v903, %v1295
      %v1297 = vpop.f32.mrb[0].mxu0
      %v1298 = vadd.f32 %v903, %v1297
      %1299 = vmatprep.mubr.f32.mxu0 0.0
      %1300 = vmatmul.mubr.f32.gmra.mrb[0].mxu0 %v1113
      %v1301 = vpop.f32.mrb[0].mxu0
      %v1302 = vadd.f32 %v908, %v1301
      %v1303 = vpop.f32.mrb[0].mxu0
      %v1304 = vadd.f32 %v908, %v1303
      %1305 = vmatprep.mubr.f32.mxu0 0.0
      %1306 = vmatmul.mubr.f32.gmra.mrb[0].mxu0 %v1116
      %v1307 = vpop.f32.mrb[0].mxu0
      %v1308 = vadd.f32 %v913, %v1307
      %v1309 = vpop.f32.mrb[0].mxu0
      %v1310 = vadd.f32 %v913, %v1309
      %1311 = vmatprep.mubr.f32.mxu0 0.0
      %1312 = vmatmul.mubr.f32.gmra.mrb[0].mxu0 %v1119
      %v1313 = vpop.f32.mrb[0].mxu0
      %v1314 = vadd.f32 %v918, %v1313
      %v1315 = vpop.f32.mrb[0].mxu0
      %v1316 = vadd.f32 %v918, %v1315
      %1317 = vmatprep.mubr.f32.mxu0 0.0
      %1318 = vmatmul.mubr.f32.gmra.mrb[0].mxu0 %v1122
      %v1319 = vpop.f32.mrb[0].mxu0
      %v1320 = vadd.f32 %v923, %v1319
      %v1321 = vpop.f32.mrb[0].mxu0
      %v1322 = vadd.f32 %v923, %v1321
      %1323 = vmatprep.mubr.f32.mxu0 0.0
      %1324 = vmatmul.mubr.f32.gmra.mrb[0].mxu0 %v1125
      %v1325 = vpop.f32.mrb[0].mxu0
      %v1326 = vadd.f32 %v928, %v1325
      %v1327 = vpop.f32.mrb[0].mxu0
      %v1328 = vadd.f32 %v928, %v1327
      %1329 = vmatprep.mubr.f32.mxu0 0.0
      %1330 = vmatmul.mubr.f32.gmra.mrb[0].mxu0 %v1128
      %v1331 = vpop.f32.mrb[0].mxu0
      %v1332 = vadd.f32 %v933, %v1331
      %v1333 = vpop.f32.mrb[0].mxu0
      %v1334 = vadd.f32 %v933, %v1333
      %1335 = vmatprep.mubr.f32.mxu0 0.0
      %1336 = vmatmul.mubr.f32.gmra.mrb[0].mxu0 %v1131
      %v1337 = vpop.f32.mrb[0].mxu0
      %v1338 = vadd.f32 %v938, %v1337
      %v1339 = vpop.f32.mrb[0].mxu0
      %v1340 = vadd.f32 %v938, %v1339
      %1341 = vmatprep.mubr.f32.mxu0 0.0
      %1342 = vmatmul.mubr.f32.gmra.mrb[0].mxu0 %v1134
      %v1343 = vpop.f32.mrb[0].mxu0
      %v1344 = vadd.f32 %v943, %v1343
      %v1345 = vpop.f32.mrb[0].mxu0
      %v1346 = vadd.f32 %v943, %v1345
      %1347 = vmatprep.mubr.f32.mxu0 0.0
      %1348 = vmatmul.mubr.f32.gmra.mrb[0].mxu0 %v1137
      %v1349 = vpop.f32.mrb[0].mxu0
      %v1350 = vadd.f32 %v948, %v1349
      %v1351 = vpop.f32.mrb[0].mxu0
      %v1352 = vadd.f32 %v948, %v1351
      %1353 = vmatprep.mubr.f32.mxu0 0.0
      %1354 = vmatmul.mubr.f32.gmra.mrb[0].mxu0 %v1140
      %v1355 = vpop.f32.mrb[0].mxu0
      %v1356 = vadd.f32 %v953, %v1355
      %v1357 = vpop.f32.mrb[0].mxu0
      %v1358 = vadd.f32 %v953, %v1357
      %1359 = vmatprep.mubr.f32.mxu0 0.0
      %1360 = vmatmul.mubr.f32.gmra.mrb[0].mxu0 %v1143
      %v1361 = vpop.f32.mrb[0].mxu0
      %v1362 = vadd.f32 %v958, %v1361
      %v1363 = vpop.f32.mrb[0].mxu0
      %v1364 = vadd.f32 %v958, %v1363
      %1365 = vmatprep.mubr.f32.mxu0 0.0
      %1366 = vmatmul.mubr.f32.gmra.mrb[0].mxu0 %v1146
      %v1367 = vpop.f32.mrb[0].mxu0
      %v1368 = vadd.f32 %v963, %v1367
      %v1369 = vpop.f32.mrb[0].mxu0
      %v1370 = vadd.f32 %v963, %v1369
      %1371 = vmatprep.mubr.f32.mxu0 0.0
      %1372 = vmatmul.mubr.f32.gmra.mrb[0].mxu0 %v1149
      %v1373 = vpop.f32.mrb[0].mxu0
      %v1374 = vadd.f32 %v968, %v1373
      %v1375 = vpop.f32.mrb[0].mxu0
      %v1376 = vadd.f32 %v968, %v1375
      %1377 = vmatprep.mubr.f32.mxu0 0.0
      %1378 = vmatmul.mubr.f32.gmra.mrb[0].mxu0 %v1152
      %v1379 = vpop.f32.mrb[0].mxu0
      %v1380 = vadd.f32 %v973, %v1379
      %v1381 = vpop.f32.mrb[0].mxu0
      %v1382 = vadd.f32 %v973, %v1381
      %1383 = vmatprep.mubr.f32.mxu0 0.0
      %1384 = vmatmul.mubr.f32.gmra.mrb[0].mxu0 %v1155
      %v1385 = vpop.f32.mrb[0].mxu0
      %v1386 = vadd.f32 %v978, %v1385
      %v1387 = vpop.f32.mrb[0].mxu0
      %v1388 = vadd.f32 %v978, %v1387
      %1389 = vmatprep.mubr.f32.mxu0 0.0
      %1390 = vmatmul.mubr.f32.gmra.mrb[0].mxu0 %v1158
      %v1391 = vpop.f32.mrb[0].mxu0
      %v1392 = vadd.f32 %v983, %v1391
      %v1393 = vpop.f32.mrb[0].mxu0
      %v1394 = vadd.f32 %v983, %v1393
      %1395 = vmatprep.mubr.f32.mxu0 0.0
      %1396 = vmatmul.mubr.f32.gmra.mrb[0].mxu0 %v1161
      %v1397 = vpop.f32.mrb[0].mxu0
      %v1398 = vadd.f32 %v988, %v1397
      %v1399 = vpop.f32.mrb[0].mxu0
      %v1400 = vadd.f32 %v988, %v1399
      %1401 = vmatprep.mubr.f32.mxu0 0.0
      %1402 = vmatmul.mubr.f32.gmra.mrb[0].mxu0 %v1164
      %v1403 = vpop.f32.mrb[0].mxu0
      %v1404 = vadd.f32 %v993, %v1403
      %v1405 = vpop.f32.mrb[0].mxu0
      %v1406 = vadd.f32 %v993, %v1405
      %1407 = vmatprep.mubr.f32.mxu0 0.0
      %1408 = vmatmul.mubr.f32.gmra.mrb[0].mxu0 %v1167
      %v1409 = vpop.f32.mrb[0].mxu0
      %v1410 = vadd.f32 %v998, %v1409
      %v1411 = vpop.f32.mrb[0].mxu0
      %v1412 = vadd.f32 %v998, %v1411
      %1413 = vmatprep.mubr.f32.mxu0 0.0
      %1414 = vmatmul.mubr.f32.gmra.mrb[0].mxu0 %v1170
      %v1415 = vpop.f32.mrb[0].mxu0
      %v1416 = vadd.f32 %v1003, %v1415
      %v1417 = vpop.f32.mrb[0].mxu0
      %v1418 = vadd.f32 %v1003, %v1417
      %1419 = vmatprep.mubr.f32.mxu0 0.0
      %1420 = vmatmul.mubr.f32.gmra.mrb[0].mxu0 %v1173
      %v1421 = vpop.f32.mrb[0].mxu0
      %v1422 = vadd.f32 %v1008, %v1421
      %v1423 = vpop.f32.mrb[0].mxu0
      %v1424 = vadd.f32 %v1008, %v1423
      %1425 = vmatprep.mubr.f32.mxu0 0.0
      %1426 = vmatmul.mubr.f32.gmra.mrb[0].mxu0 %v1176
      %v1427 = vpop.f32.mrb[0].mxu0
      %v1428 = vadd.f32 %v1013, %v1427
      %v1429 = vpop.f32.mrb[0].mxu0
      %v1430 = vadd.f32 %v1013, %v1429
      %1431 = vmatprep.mubr.f32.mxu0 0.0
      %1432 = vmatmul.mubr.f32.gmra.mrb[0].mxu0 %v1179
      %v1433 = vpop.f32.mrb[0].mxu0
      %v1434 = vadd.f32 %v1018, %v1433
      %v1435 = vpop.f32.mrb[0].mxu0
      %v1436 = vadd.f32 %v1018, %v1435
      %1437 = vdwg.mxu0
      %v1438 = vmax.f32 %v1248, 0.0
      %v1439 = vmax.f32 %v1250, 0.0
      %v1440 = vmax.f32 %v1254, 0.0
      %v1441 = vmax.f32 %v1256, 0.0
      %v1442 = vmax.f32 %v1260, 0.0
      %v1443 = vmax.f32 %v1262, 0.0
      %v1444 = vmax.f32 %v1266, 0.0
      %v1445 = vmax.f32 %v1268, 0.0
      %v1446 = vmax.f32 %v1272, 0.0
      %v1447 = vmax.f32 %v1274, 0.0
      %v1448 = vmax.f32 %v1278, 0.0
      %v1449 = vmax.f32 %v1280, 0.0
      %v1450 = vmax.f32 %v1284, 0.0
      %v1451 = vmax.f32 %v1286, 0.0
      %v1452 = vmax.f32 %v1290, 0.0
      %v1453 = vmax.f32 %v1292, 0.0
      %v1454 = vmax.f32 %v1296, 0.0
      %v1455 = vmax.f32 %v1298, 0.0
      %v1456 = vmax.f32 %v1302, 0.0
      %v1457 = vmax.f32 %v1304, 0.0
      %v1458 = vmax.f32 %v1308, 0.0
      %v1459 = vmax.f32 %v1310, 0.0
      %v1460 = vmax.f32 %v1314, 0.0
      %v1461 = vmax.f32 %v1316, 0.0
      %v1462 = vmax.f32 %v1320, 0.0
      %v1463 = vmax.f32 %v1322, 0.0
      %v1464 = vmax.f32 %v1326, 0.0
      %v1465 = vmax.f32 %v1328, 0.0
      %v1466 = vmax.f32 %v1332, 0.0
      %v1467 = vmax.f32 %v1334, 0.0
      %v1468 = vmax.f32 %v1338, 0.0
      %v1469 = vmax.f32 %v1340, 0.0
      %v1470 = vmax.f32 %v1344, 0.0
      %v1471 = vmax.f32 %v1346, 0.0
      %v1472 = vmax.f32 %v1350, 0.0
      %v1473 = vmax.f32 %v1352, 0.0
      %v1474 = vmax.f32 %v1356, 0.0
      %v1475 = vmax.f32 %v1358, 0.0
      %v1476 = vmax.f32 %v1362, 0.0
      %v1477 = vmax.f32 %v1364, 0.0
      %v1478 = vmax.f32 %v1368, 0.0
      %v1479 = vmax.f32 %v1370, 0.0
      %v1480 = vmax.f32 %v1374, 0.0
      %v1481 = vmax.f32 %v1376, 0.0
      %v1482 = vmax.f32 %v1380, 0.0
      %v1483 = vmax.f32 %v1382, 0.0
      %v1484 = vmax.f32 %v1386, 0.0
      %v1485 = vmax.f32 %v1388, 0.0
      %v1486 = vmax.f32 %v1392, 0.0
      %v1487 = vmax.f32 %v1394, 0.0
      %v1488 = vmax.f32 %v1398, 0.0
      %v1489 = vmax.f32 %v1400, 0.0
      %v1490 = vmax.f32 %v1404, 0.0
      %v1491 = vmax.f32 %v1406, 0.0
      %v1492 = vmax.f32 %v1410, 0.0
      %v1493 = vmax.f32 %v1412, 0.0
      %v1494 = vmax.f32 %v1416, 0.0
      %v1495 = vmax.f32 %v1418, 0.0
      %v1496 = vmax.f32 %v1422, 0.0
      %v1497 = vmax.f32 %v1424, 0.0
      %v1498 = vmax.f32 %v1428, 0.0
      %v1499 = vmax.f32 %v1430, 0.0
      %v1500 = vmax.f32 %v1434, 0.0
      %v1501 = vmax.f32 %v1436, 0.0
      %v1502 = vadd.f32 %v1438, %v1439
      %1503 = vadd.xlane.f32.xlu0 %v1502
      %v1504 = vpop.xlane.xlu0 %1503
      %v1505 = vadd.f32 %v1440, %v1441
      %1506 = vadd.xlane.f32.xlu0 %v1505
      %v1507 = vpop.xlane.xlu0 %1506
      %v1508 = vadd.f32 %v1442, %v1443
      %1509 = vadd.xlane.f32.xlu0 %v1508
      %v1510 = vpop.xlane.xlu0 %1509
      %v1511 = vadd.f32 %v1444, %v1445
      %1512 = vadd.xlane.f32.xlu0 %v1511
      %v1513 = vpop.xlane.xlu0 %1512
      %v1514 = vadd.f32 %v1446, %v1447
      %1515 = vadd.xlane.f32.xlu0 %v1514
      %v1516 = vpop.xlane.xlu0 %1515
      %v1517 = vadd.f32 %v1448, %v1449
      %1518 = vadd.xlane.f32.xlu0 %v1517
      %v1519 = vpop.xlane.xlu0 %1518
      %v1520 = vadd.f32 %v1450, %v1451
      %1521 = vadd.xlane.f32.xlu0 %v1520
      %v1522 = vpop.xlane.xlu0 %1521
      %v1523 = vadd.f32 %v1452, %v1453
      %1524 = vadd.xlane.f32.xlu0 %v1523
      %v1525 = vpop.xlane.xlu0 %1524
      %v1526 = vadd.f32 %v1454, %v1455
      %1527 = vadd.xlane.f32.xlu0 %v1526
      %v1528 = vpop.xlane.xlu0 %1527
      %v1529 = vadd.f32 %v1456, %v1457
      %1530 = vadd.xlane.f32.xlu0 %v1529
      %v1531 = vpop.xlane.xlu0 %1530
      %v1532 = vadd.f32 %v1458, %v1459
      %1533 = vadd.xlane.f32.xlu0 %v1532
      %v1534 = vpop.xlane.xlu0 %1533
      %v1535 = vadd.f32 %v1460, %v1461
      %1536 = vadd.xlane.f32.xlu0 %v1535
      %v1537 = vpop.xlane.xlu0 %1536
      %v1538 = vadd.f32 %v1462, %v1463
      %1539 = vadd.xlane.f32.xlu0 %v1538
      %v1540 = vpop.xlane.xlu0 %1539
      %v1541 = vadd.f32 %v1464, %v1465
      %1542 = vadd.xlane.f32.xlu0 %v1541
      %v1543 = vpop.xlane.xlu0 %1542
      %v1544 = vadd.f32 %v1466, %v1467
      %1545 = vadd.xlane.f32.xlu0 %v1544
      %v1546 = vpop.xlane.xlu0 %1545
      %v1547 = vadd.f32 %v1468, %v1469
      %1548 = vadd.xlane.f32.xlu0 %v1547
      %v1549 = vpop.xlane.xlu0 %1548
      %v1550 = vadd.f32 %v1470, %v1471
      %1551 = vadd.xlane.f32.xlu0 %v1550
      %v1552 = vpop.xlane.xlu0 %1551
      %v1553 = vadd.f32 %v1472, %v1473
      %1554 = vadd.xlane.f32.xlu0 %v1553
      %v1555 = vpop.xlane.xlu0 %1554
      %v1556 = vadd.f32 %v1474, %v1475
      %1557 = vadd.xlane.f32.xlu0 %v1556
      %v1558 = vpop.xlane.xlu0 %1557
      %v1559 = vadd.f32 %v1476, %v1477
      %1560 = vadd.xlane.f32.xlu0 %v1559
      %v1561 = vpop.xlane.xlu0 %1560
      %v1562 = vadd.f32 %v1478, %v1479
      %1563 = vadd.xlane.f32.xlu0 %v1562
      %v1564 = vpop.xlane.xlu0 %1563
      %v1565 = vadd.f32 %v1480, %v1481
      %1566 = vadd.xlane.f32.xlu0 %v1565
      %v1567 = vpop.xlane.xlu0 %1566
      %v1568 = vadd.f32 %v1482, %v1483
      %1569 = vadd.xlane.f32.xlu0 %v1568
      %v1570 = vpop.xlane.xlu0 %1569
      %v1571 = vadd.f32 %v1484, %v1485
      %1572 = vadd.xlane.f32.xlu0 %v1571
      %v1573 = vpop.xlane.xlu0 %1572
      %v1574 = vadd.f32 %v1486, %v1487
      %1575 = vadd.xlane.f32.xlu0 %v1574
      %v1576 = vpop.xlane.xlu0 %1575
      %v1577 = vadd.f32 %v1488, %v1489
      %1578 = vadd.xlane.f32.xlu0 %v1577
      %v1579 = vpop.xlane.xlu0 %1578
      %v1580 = vadd.f32 %v1490, %v1491
      %1581 = vadd.xlane.f32.xlu0 %v1580
      %v1582 = vpop.xlane.xlu0 %1581
      %v1583 = vadd.f32 %v1492, %v1493
      %1584 = vadd.xlane.f32.xlu0 %v1583
      %v1585 = vpop.xlane.xlu0 %1584
      %v1586 = vadd.f32 %v1494, %v1495
      %1587 = vadd.xlane.f32.xlu0 %v1586
      %v1588 = vpop.xlane.xlu0 %1587
      %v1589 = vadd.f32 %v1496, %v1497
      %1590 = vadd.xlane.f32.xlu0 %v1589
      %v1591 = vpop.xlane.xlu0 %1590
      %v1592 = vadd.f32 %v1498, %v1499
      %1593 = vadd.xlane.f32.xlu0 %v1592
      %v1594 = vpop.xlane.xlu0 %1593
      %v1595 = vadd.f32 %v1500, %v1501
      %1596 = vadd.xlane.f32.xlu0 %v1595
      %v1597 = vpop.xlane.xlu0 %1596
      %v1598 = vrcp.pop 256.0
      %v1599 = vmul.f32 %v1504, %v1598
      %v1600 = vmul.f32 %v1507, %v1598
      %v1601 = vmul.f32 %v1510, %v1598
      %v1602 = vmul.f32 %v1513, %v1598
      %v1603 = vmul.f32 %v1516, %v1598
      %v1604 = vmul.f32 %v1519, %v1598
      %v1605 = vmul.f32 %v1522, %v1598
      %v1606 = vmul.f32 %v1525, %v1598
      %v1607 = vmul.f32 %v1528, %v1598
      %v1608 = vmul.f32 %v1531, %v1598
      %v1609 = vmul.f32 %v1534, %v1598
      %v1610 = vmul.f32 %v1537, %v1598
      %v1611 = vmul.f32 %v1540, %v1598
      %v1612 = vmul.f32 %v1543, %v1598
      %v1613 = vmul.f32 %v1546, %v1598
      %v1614 = vmul.f32 %v1549, %v1598
      %v1615 = vmul.f32 %v1552, %v1598
      %v1616 = vmul.f32 %v1555, %v1598
      %v1617 = vmul.f32 %v1558, %v1598
      %v1618 = vmul.f32 %v1561, %v1598
      %v1619 = vmul.f32 %v1564, %v1598
      %v1620 = vmul.f32 %v1567, %v1598
      %v1621 = vmul.f32 %v1570, %v1598
      %v1622 = vmul.f32 %v1573, %v1598
      %v1623 = vmul.f32 %v1576, %v1598
      %v1624 = vmul.f32 %v1579, %v1598
      %v1625 = vmul.f32 %v1582, %v1598
      %v1626 = vmul.f32 %v1585, %v1598
      %v1627 = vmul.f32 %v1588, %v1598
      %v1628 = vmul.f32 %v1591, %v1598
      %v1629 = vmul.f32 %v1594, %v1598
      %v1630 = vmul.f32 %v1597, %v1598
      %v1631 = vld [vmem:[%s4] sm:$0xff]
      %v1632 = vld [vmem:[%s4 + $0x8] sm:$0xff]
      %v1633 = vld [vmem:[%s4 + $0x10] sm:$0xff]
      %v1634 = vld [vmem:[%s4 + $0x18] sm:$0xff]
      %v1635 = vld [vmem:[%s4 + $0x20] sm:$0xff]
      %v1636 = vld [vmem:[%s4 + $0x28] sm:$0xff]
      %v1637 = vld [vmem:[%s4 + $0x30] sm:$0xff]
      %v1638 = vld [vmem:[%s4 + $0x38] sm:$0xff]
      %v1639 = vld [vmem:[%s4 + $0x40] sm:$0xff]
      %v1640 = vld [vmem:[%s4 + $0x48] sm:$0xff]
      %v1641 = vld [vmem:[%s4 + $0x50] sm:$0xff]
      %v1642 = vld [vmem:[%s4 + $0x58] sm:$0xff]
      %v1643 = vld [vmem:[%s4 + $0x60] sm:$0xff]
      %v1644 = vld [vmem:[%s4 + $0x68] sm:$0xff]
      %v1645 = vld [vmem:[%s4 + $0x70] sm:$0xff]
      %v1646 = vld [vmem:[%s4 + $0x78] sm:$0xff]
      %v1647 = vld [vmem:[%s4 + $0x80] sm:$0xff]
      %v1648 = vld [vmem:[%s4 + $0x88] sm:$0xff]
      %v1649 = vld [vmem:[%s4 + $0x90] sm:$0xff]
      %v1650 = vld [vmem:[%s4 + $0x98] sm:$0xff]
      %v1651 = vld [vmem:[%s4 + $0xa0] sm:$0xff]
      %v1652 = vld [vmem:[%s4 + $0xa8] sm:$0xff]
      %v1653 = vld [vmem:[%s4 + $0xb0] sm:$0xff]
      %v1654 = vld [vmem:[%s4 + $0xb8] sm:$0xff]
      %v1655 = vld [vmem:[%s4 + $0xc0] sm:$0xff]
      %v1656 = vld [vmem:[%s4 + $0xc8] sm:$0xff]
      %v1657 = vld [vmem:[%s4 + $0xd0] sm:$0xff]
      %v1658 = vld [vmem:[%s4 + $0xd8] sm:$0xff]
      %v1659 = vld [vmem:[%s4 + $0xe0] sm:$0xff]
      %v1660 = vld [vmem:[%s4 + $0xe8] sm:$0xff]
      %v1661 = vld [vmem:[%s4 + $0xf0] sm:$0xff]
      %v1662 = vld [vmem:[%s4 + $0xf8] sm:$0xff]
      %v1663 = vpack.c.bf16 %v1600, %v1599
      %v1664 = vpack.c.bf16 %v1602, %v1601
      %v1665 = vpack.c.bf16 %v1604, %v1603
      %v1666 = vpack.c.bf16 %v1606, %v1605
      %v1667 = vpack.c.bf16 %v1608, %v1607
      %v1668 = vpack.c.bf16 %v1610, %v1609
      %v1669 = vpack.c.bf16 %v1612, %v1611
      %v1670 = vpack.c.bf16 %v1614, %v1613
      %v1671 = vpack.c.bf16 %v1616, %v1615
      %v1672 = vpack.c.bf16 %v1618, %v1617
      %v1673 = vpack.c.bf16 %v1620, %v1619
      %v1674 = vpack.c.bf16 %v1622, %v1621
      %v1675 = vpack.c.bf16 %v1624, %v1623
      %v1676 = vpack.c.bf16 %v1626, %v1625
      %v1677 = vpack.c.bf16 %v1628, %v1627
      %v1678 = vpack.c.bf16 %v1630, %v1629
      %v1711 = vunpack.c.l.b16 %v1631
      %v1712 = vunpack.c.h.b16 %v1631
      %v1713 = vunpack.c.l.b16 %v1632
      %v1714 = vunpack.c.h.b16 %v1632
      %v1715 = vunpack.c.l.b16 %v1633
      %v1716 = vunpack.c.h.b16 %v1633
      %v1717 = vunpack.c.l.b16 %v1634
      %v1718 = vunpack.c.h.b16 %v1634
      %v1719 = vunpack.c.l.b16 %v1635
      %v1720 = vunpack.c.h.b16 %v1635
      %v1721 = vunpack.c.l.b16 %v1636
      %v1722 = vunpack.c.h.b16 %v1636
      %v1723 = vunpack.c.l.b16 %v1637
      %v1724 = vunpack.c.h.b16 %v1637
      %v1725 = vunpack.c.l.b16 %v1638
      %v1726 = vunpack.c.h.b16 %v1638
      %v1727 = vunpack.c.l.b16 %v1639
      %v1728 = vunpack.c.h.b16 %v1639
      %v1729 = vunpack.c.l.b16 %v1640
      %v1730 = vunpack.c.h.b16 %v1640
      %v1731 = vunpack.c.l.b16 %v1641
      %v1732 = vunpack.c.h.b16 %v1641
      %v1733 = vunpack.c.l.b16 %v1642
      %v1734 = vunpack.c.h.b16 %v1642
      %v1735 = vunpack.c.l.b16 %v1643
      %v1736 = vunpack.c.h.b16 %v1643
      %v1737 = vunpack.c.l.b16 %v1644
      %v1738 = vunpack.c.h.b16 %v1644
      %v1739 = vunpack.c.l.b16 %v1645
      %v1740 = vunpack.c.h.b16 %v1645
      %v1741 = vunpack.c.l.b16 %v1646
      %v1742 = vunpack.c.h.b16 %v1646
      %v1743 = vunpack.c.l.b16 %v1647
      %v1744 = vunpack.c.h.b16 %v1647
      %v1745 = vunpack.c.l.b16 %v1648
      %v1746 = vunpack.c.h.b16 %v1648
      %v1747 = vunpack.c.l.b16 %v1649
      %v1748 = vunpack.c.h.b16 %v1649
      %v1749 = vunpack.c.l.b16 %v1650
      %v1750 = vunpack.c.h.b16 %v1650
      %v1751 = vunpack.c.l.b16 %v1651
      %v1752 = vunpack.c.h.b16 %v1651
      %v1753 = vunpack.c.l.b16 %v1652
      %v1754 = vunpack.c.h.b16 %v1652
      %v1755 = vunpack.c.l.b16 %v1653
      %v1756 = vunpack.c.h.b16 %v1653
      %v1757 = vunpack.c.l.b16 %v1654
      %v1758 = vunpack.c.h.b16 %v1654
      %v1759 = vunpack.c.l.b16 %v1655
      %v1760 = vunpack.c.h.b16 %v1655
      %v1761 = vunpack.c.l.b16 %v1656
      %v1762 = vunpack.c.h.b16 %v1656
      %v1763 = vunpack.c.l.b16 %v1657
      %v1764 = vunpack.c.h.b16 %v1657
      %v1765 = vunpack.c.l.b16 %v1658
      %v1766 = vunpack.c.h.b16 %v1658
      %v1767 = vunpack.c.l.b16 %v1659
      %v1768 = vunpack.c.h.b16 %v1659
      %v1769 = vunpack.c.l.b16 %v1660
      %v1770 = vunpack.c.h.b16 %v1660
      %v1771 = vunpack.c.l.b16 %v1661
      %v1772 = vunpack.c.h.b16 %v1661
      %v1773 = vunpack.c.l.b16 %v1662
      %v1774 = vunpack.c.h.b16 %v1662
      %v1775 = vpack.c.b16 %v1713, %v1711
      %v1776 = vpack.c.b16 %v1714, %v1712
      %v1777 = vpack.c.b16 %v1717, %v1715
      %v1778 = vpack.c.b16 %v1718, %v1716
      %v1779 = vpack.c.b16 %v1721, %v1719
      %v1780 = vpack.c.b16 %v1722, %v1720
      %v1781 = vpack.c.b16 %v1725, %v1723
      %v1782 = vpack.c.b16 %v1726, %v1724
      %v1783 = vpack.c.b16 %v1729, %v1727
      %v1784 = vpack.c.b16 %v1730, %v1728
      %v1785 = vpack.c.b16 %v1733, %v1731
      %v1786 = vpack.c.b16 %v1734, %v1732
      %v1787 = vpack.c.b16 %v1737, %v1735
      %v1788 = vpack.c.b16 %v1738, %v1736
      %v1789 = vpack.c.b16 %v1741, %v1739
      %v1790 = vpack.c.b16 %v1742, %v1740
      %v1791 = vpack.c.b16 %v1745, %v1743
      %v1792 = vpack.c.b16 %v1746, %v1744
      %v1793 = vpack.c.b16 %v1749, %v1747
      %v1794 = vpack.c.b16 %v1750, %v1748
      %v1795 = vpack.c.b16 %v1753, %v1751
      %v1796 = vpack.c.b16 %v1754, %v1752
      %v1797 = vpack.c.b16 %v1757, %v1755
      %v1798 = vpack.c.b16 %v1758, %v1756
      %v1799 = vpack.c.b16 %v1761, %v1759
      %v1800 = vpack.c.b16 %v1762, %v1760
      %v1801 = vpack.c.b16 %v1765, %v1763
      %v1802 = vpack.c.b16 %v1766, %v1764
      %v1803 = vpack.c.b16 %v1769, %v1767
      %v1804 = vpack.c.b16 %v1770, %v1768
      %v1805 = vpack.c.b16 %v1773, %v1771
      %v1806 = vpack.c.b16 %v1774, %v1772
      %1839 = vrot.lane.b32.xlu0 %v273, 127
      %v1840 = vpop.permute.xlu0 %1839
      %1841 = vrot.lane.b32.xlu0 %v274, 127
      %v1842 = vpop.permute.xlu0 %1841
      %1843 = vrot.lane.b32.xlu0 %v275, 127
      %v1844 = vpop.permute.xlu0 %1843
      %1845 = vrot.lane.b32.xlu0 %v276, 127
      %v1846 = vpop.permute.xlu0 %1845
      %1847 = vrot.lane.b32.xlu0 %v277, 127
      %v1848 = vpop.permute.xlu0 %1847
      %1849 = vrot.lane.b32.xlu0 %v278, 127
      %v1850 = vpop.permute.xlu0 %1849
      %1851 = vrot.lane.b32.xlu0 %v279, 127
      %v1852 = vpop.permute.xlu0 %1851
      %1853 = vrot.lane.b32.xlu0 %v280, 127
      %v1854 = vpop.permute.xlu0 %1853
      %1855 = vrot.lane.b32.xlu0 %v281, 127
      %v1856 = vpop.permute.xlu0 %1855
      %1857 = vrot.lane.b32.xlu0 %v282, 127
      %v1858 = vpop.permute.xlu0 %1857
      %1859 = vrot.lane.b32.xlu0 %v283, 127
      %v1860 = vpop.permute.xlu0 %1859
      %1861 = vrot.lane.b32.xlu0 %v284, 127
      %v1862 = vpop.permute.xlu0 %1861
      %1863 = vrot.lane.b32.xlu0 %v285, 127
      %v1864 = vpop.permute.xlu0 %1863
      %1865 = vrot.lane.b32.xlu0 %v286, 127
      %v1866 = vpop.permute.xlu0 %1865
      %1867 = vrot.lane.b32.xlu0 %v287, 127
      %v1868 = vpop.permute.xlu0 %1867
      %1869 = vrot.lane.b32.xlu0 %v288, 127
      %v1870 = vpop.permute.xlu0 %1869
      %1871 = vrot.lane.b32.xlu0 %v289, 127
      %v1872 = vpop.permute.xlu0 %1871
      %1873 = vrot.lane.b32.xlu0 %v290, 127
      %v1874 = vpop.permute.xlu0 %1873
      %1875 = vrot.lane.b32.xlu0 %v291, 127
      %v1876 = vpop.permute.xlu0 %1875
      %1877 = vrot.lane.b32.xlu0 %v292, 127
      %v1878 = vpop.permute.xlu0 %1877
      %1879 = vrot.lane.b32.xlu0 %v293, 127
      %v1880 = vpop.permute.xlu0 %1879
      %1881 = vrot.lane.b32.xlu0 %v294, 127
      %v1882 = vpop.permute.xlu0 %1881
      %1883 = vrot.lane.b32.xlu0 %v295, 127
      %v1884 = vpop.permute.xlu0 %1883
      %1885 = vrot.lane.b32.xlu0 %v296, 127
      %v1886 = vpop.permute.xlu0 %1885
      %1887 = vrot.lane.b32.xlu0 %v297, 127
      %v1888 = vpop.permute.xlu0 %1887
      %1889 = vrot.lane.b32.xlu0 %v298, 127
      %v1890 = vpop.permute.xlu0 %1889
      %1891 = vrot.lane.b32.xlu0 %v299, 127
      %v1892 = vpop.permute.xlu0 %1891
      %1893 = vrot.lane.b32.xlu0 %v300, 127
      %v1894 = vpop.permute.xlu0 %1893
      %1895 = vrot.lane.b32.xlu0 %v301, 127
      %v1896 = vpop.permute.xlu0 %1895
      %1897 = vrot.lane.b32.xlu0 %v302, 127
      %v1898 = vpop.permute.xlu0 %1897
      %1899 = vrot.lane.b32.xlu0 %v303, 127
      %v1900 = vpop.permute.xlu0 %1899
      %1901 = vrot.lane.b32.xlu0 %v304, 127
      %v1902 = vpop.permute.xlu0 %1901
      %1935 = vmatprep.subr.bf16.mxu0 0
      %1936 = vmatpush1.bf16.msra.mxu0 %v1663
      %1937 = vmatprep.subr.bf16.mxu0 0
      %1938 = vmatpush1.bf16.msra.mxu0 %v1664
      %1939 = vmatprep.subr.bf16.mxu0 0
      %1940 = vmatpush1.bf16.msra.mxu0 %v1665
      %1941 = vmatprep.subr.bf16.mxu0 0
      %1942 = vmatpush1.bf16.msra.mxu0 %v1666
      %1943 = vmatprep.subr.bf16.mxu0 0
      %1944 = vmatpush1.bf16.msra.mxu0 %v1667
      %1945 = vmatprep.subr.bf16.mxu0 0
      %1946 = vmatpush1.bf16.msra.mxu0 %v1668
      %1947 = vmatprep.subr.bf16.mxu0 0
      %1948 = vmatpush1.bf16.msra.mxu0 %v1669
      %1949 = vmatprep.subr.bf16.mxu0 0
      %1950 = vmatpush1.bf16.msra.mxu0 %v1670
      %1951 = vmatprep.subr.bf16.mxu0 0
      %1952 = vmatpush1.bf16.msra.mxu0 %v1671
      %1953 = vmatprep.subr.bf16.mxu0 0
      %1954 = vmatpush1.bf16.msra.mxu0 %v1672
      %1955 = vmatprep.subr.bf16.mxu0 0
      %1956 = vmatpush1.bf16.msra.mxu0 %v1673
      %1957 = vmatprep.subr.bf16.mxu0 0
      %1958 = vmatpush1.bf16.msra.mxu0 %v1674
      %1959 = vmatprep.subr.bf16.mxu0 0
      %1960 = vmatpush1.bf16.msra.mxu0 %v1675
      %1961 = vmatprep.subr.bf16.mxu0 0
      %1962 = vmatpush1.bf16.msra.mxu0 %v1676
      %1963 = vmatprep.subr.bf16.mxu0 0
      %1964 = vmatpush1.bf16.msra.mxu0 %v1677
      %1965 = vmatprep.subr.bf16.mxu0 0
      %1966 = vmatpush1.bf16.msra.mxu0 %v1678
      %1967 = vmatprep.mubr.bf16.mxu0 %v1776
      %1968 = vmatmul.mubr.bf16.gmra.mrb[0].mxu0 %v1775
      %v1969 = vpop.f32.mrb[0].mxu0
      %v1970 = vadd.f32 %v1840, %v1969
      %v1971 = vpop.f32.mrb[0].mxu0
      %v1972 = vpop.f32.mrb[0].mxu0
      %v1973 = vadd.f32 %v1842, %v1972
      %v1974 = vpop.f32.mrb[0].mxu0
      %1975 = vmatprep.mubr.bf16.mxu0 %v1778
      %1976 = vmatmul.mubr.bf16.gmra.mrb[0].mxu0 %v1777
      %v1977 = vpop.f32.mrb[0].mxu0
      %v1978 = vadd.f32 %v1844, %v1977
      %v1979 = vpop.f32.mrb[0].mxu0
      %v1980 = vpop.f32.mrb[0].mxu0
      %v1981 = vadd.f32 %v1846, %v1980
      %v1982 = vpop.f32.mrb[0].mxu0
      %1983 = vmatprep.mubr.bf16.mxu0 %v1780
      %1984 = vmatmul.mubr.bf16.gmra.mrb[0].mxu0 %v1779
      %v1985 = vpop.f32.mrb[0].mxu0
      %v1986 = vadd.f32 %v1848, %v1985
      %v1987 = vpop.f32.mrb[0].mxu0
      %v1988 = vpop.f32.mrb[0].mxu0
      %v1989 = vadd.f32 %v1850, %v1988
      %v1990 = vpop.f32.mrb[0].mxu0
      %1991 = vmatprep.mubr.bf16.mxu0 %v1782
      %1992 = vmatmul.mubr.bf16.gmra.mrb[0].mxu0 %v1781
      %v1993 = vpop.f32.mrb[0].mxu0
      %v1994 = vadd.f32 %v1852, %v1993
      %v1995 = vpop.f32.mrb[0].mxu0
      %v1996 = vpop.f32.mrb[0].mxu0
      %v1997 = vadd.f32 %v1854, %v1996
      %v1998 = vpop.f32.mrb[0].mxu0
      %1999 = vmatprep.mubr.bf16.mxu0 %v1784
      %2000 = vmatmul.mubr.bf16.gmra.mrb[0].mxu0 %v1783
      %v2001 = vpop.f32.mrb[0].mxu0
      %v2002 = vadd.f32 %v1856, %v2001
      %v2003 = vpop.f32.mrb[0].mxu0
      %v2004 = vpop.f32.mrb[0].mxu0
      %v2005 = vadd.f32 %v1858, %v2004
      %v2006 = vpop.f32.mrb[0].mxu0
      %2007 = vmatprep.mubr.bf16.mxu0 %v1786
      %2008 = vmatmul.mubr.bf16.gmra.mrb[0].mxu0 %v1785
      %v2009 = vpop.f32.mrb[0].mxu0
      %v2010 = vadd.f32 %v1860, %v2009
      %v2011 = vpop.f32.mrb[0].mxu0
      %v2012 = vpop.f32.mrb[0].mxu0
      %v2013 = vadd.f32 %v1862, %v2012
      %v2014 = vpop.f32.mrb[0].mxu0
      %2015 = vmatprep.mubr.bf16.mxu0 %v1788
      %2016 = vmatmul.mubr.bf16.gmra.mrb[0].mxu0 %v1787
      %v2017 = vpop.f32.mrb[0].mxu0
      %v2018 = vadd.f32 %v1864, %v2017
      %v2019 = vpop.f32.mrb[0].mxu0
      %v2020 = vpop.f32.mrb[0].mxu0
      %v2021 = vadd.f32 %v1866, %v2020
      %v2022 = vpop.f32.mrb[0].mxu0
      %2023 = vmatprep.mubr.bf16.mxu0 %v1790
      %2024 = vmatmul.mubr.bf16.gmra.mrb[0].mxu0 %v1789
      %v2025 = vpop.f32.mrb[0].mxu0
      %v2026 = vadd.f32 %v1868, %v2025
      %v2027 = vpop.f32.mrb[0].mxu0
      %v2028 = vpop.f32.mrb[0].mxu0
      %v2029 = vadd.f32 %v1870, %v2028
      %v2030 = vpop.f32.mrb[0].mxu0
      %2031 = vmatprep.mubr.bf16.mxu0 %v1792
      %2032 = vmatmul.mubr.bf16.gmra.mrb[0].mxu0 %v1791
      %v2033 = vpop.f32.mrb[0].mxu0
      %v2034 = vadd.f32 %v1872, %v2033
      %v2035 = vpop.f32.mrb[0].mxu0
      %v2036 = vpop.f32.mrb[0].mxu0
      %v2037 = vadd.f32 %v1874, %v2036
      %v2038 = vpop.f32.mrb[0].mxu0
      %2039 = vmatprep.mubr.bf16.mxu0 %v1794
      %2040 = vmatmul.mubr.bf16.gmra.mrb[0].mxu0 %v1793
      %v2041 = vpop.f32.mrb[0].mxu0
      %v2042 = vadd.f32 %v1876, %v2041
      %v2043 = vpop.f32.mrb[0].mxu0
      %v2044 = vpop.f32.mrb[0].mxu0
      %v2045 = vadd.f32 %v1878, %v2044
      %v2046 = vpop.f32.mrb[0].mxu0
      %2047 = vmatprep.mubr.bf16.mxu0 %v1796
      %2048 = vmatmul.mubr.bf16.gmra.mrb[0].mxu0 %v1795
      %v2049 = vpop.f32.mrb[0].mxu0
      %v2050 = vadd.f32 %v1880, %v2049
      %v2051 = vpop.f32.mrb[0].mxu0
      %v2052 = vpop.f32.mrb[0].mxu0
      %v2053 = vadd.f32 %v1882, %v2052
      %v2054 = vpop.f32.mrb[0].mxu0
      %2055 = vmatprep.mubr.bf16.mxu0 %v1798
      %2056 = vmatmul.mubr.bf16.gmra.mrb[0].mxu0 %v1797
      %v2057 = vpop.f32.mrb[0].mxu0
      %v2058 = vadd.f32 %v1884, %v2057
      %v2059 = vpop.f32.mrb[0].mxu0
      %v2060 = vpop.f32.mrb[0].mxu0
      %v2061 = vadd.f32 %v1886, %v2060
      %v2062 = vpop.f32.mrb[0].mxu0
      %2063 = vmatprep.mubr.bf16.mxu0 %v1800
      %2064 = vmatmul.mubr.bf16.gmra.mrb[0].mxu0 %v1799
      %v2065 = vpop.f32.mrb[0].mxu0
      %v2066 = vadd.f32 %v1888, %v2065
      %v2067 = vpop.f32.mrb[0].mxu0
      %v2068 = vpop.f32.mrb[0].mxu0
      %v2069 = vadd.f32 %v1890, %v2068
      %v2070 = vpop.f32.mrb[0].mxu0
      %2071 = vmatprep.mubr.bf16.mxu0 %v1802
      %2072 = vmatmul.mubr.bf16.gmra.mrb[0].mxu0 %v1801
      %v2073 = vpop.f32.mrb[0].mxu0
      %v2074 = vadd.f32 %v1892, %v2073
      %v2075 = vpop.f32.mrb[0].mxu0
      %v2076 = vpop.f32.mrb[0].mxu0
      %v2077 = vadd.f32 %v1894, %v2076
      %v2078 = vpop.f32.mrb[0].mxu0
      %2079 = vmatprep.mubr.bf16.mxu0 %v1804
      %2080 = vmatmul.mubr.bf16.gmra.mrb[0].mxu0 %v1803
      %v2081 = vpop.f32.mrb[0].mxu0
      %v2082 = vadd.f32 %v1896, %v2081
      %v2083 = vpop.f32.mrb[0].mxu0
      %v2084 = vpop.f32.mrb[0].mxu0
      %v2085 = vadd.f32 %v1898, %v2084
      %v2086 = vpop.f32.mrb[0].mxu0
      %2087 = vmatprep.mubr.bf16.mxu0 %v1806
      %2088 = vmatmul.mubr.bf16.gmra.mrb[0].mxu0 %v1805
      %v2089 = vpop.f32.mrb[0].mxu0
      %v2090 = vadd.f32 %v1900, %v2089
      %v2091 = vpop.f32.mrb[0].mxu0
      %v2092 = vpop.f32.mrb[0].mxu0
      %v2093 = vadd.f32 %v1902, %v2092
      %v2094 = vpop.f32.mrb[0].mxu0
      %2095 = vdwg.mxu0
      %v2096 = vmax.f32 %v1970, 0.0
      %v2097 = vmax.f32 %v1973, 0.0
      %v2098 = vmax.f32 %v1978, 0.0
      %v2099 = vmax.f32 %v1981, 0.0
      %v2100 = vmax.f32 %v1986, 0.0
      %v2101 = vmax.f32 %v1989, 0.0
      %v2102 = vmax.f32 %v1994, 0.0
      %v2103 = vmax.f32 %v1997, 0.0
      %v2104 = vmax.f32 %v2002, 0.0
      %v2105 = vmax.f32 %v2005, 0.0
      %v2106 = vmax.f32 %v2010, 0.0
      %v2107 = vmax.f32 %v2013, 0.0
      %v2108 = vmax.f32 %v2018, 0.0
      %v2109 = vmax.f32 %v2021, 0.0
      %v2110 = vmax.f32 %v2026, 0.0
      %v2111 = vmax.f32 %v2029, 0.0
      %v2112 = vmax.f32 %v2034, 0.0
      %v2113 = vmax.f32 %v2037, 0.0
      %v2114 = vmax.f32 %v2042, 0.0
      %v2115 = vmax.f32 %v2045, 0.0
      %v2116 = vmax.f32 %v2050, 0.0
      %v2117 = vmax.f32 %v2053, 0.0
      %v2118 = vmax.f32 %v2058, 0.0
      %v2119 = vmax.f32 %v2061, 0.0
      %v2120 = vmax.f32 %v2066, 0.0
      %v2121 = vmax.f32 %v2069, 0.0
      %v2122 = vmax.f32 %v2074, 0.0
      %v2123 = vmax.f32 %v2077, 0.0
      %v2124 = vmax.f32 %v2082, 0.0
      %v2125 = vmax.f32 %v2085, 0.0
      %v2126 = vmax.f32 %v2090, 0.0
      %v2127 = vmax.f32 %v2093, 0.0
      %v2128 = vld [vmem:[%s5] sm:$0xff]
      %v2129 = vld [vmem:[%s5 + $0x8] sm:$0xff]
      %v2130 = vld [vmem:[%s5 + $0x10] sm:$0xff]
      %v2131 = vld [vmem:[%s5 + $0x18] sm:$0xff]
      %v2132 = vld [vmem:[%s5 + $0x20] sm:$0xff]
      %v2133 = vld [vmem:[%s5 + $0x28] sm:$0xff]
      %v2134 = vld [vmem:[%s5 + $0x30] sm:$0xff]
      %v2135 = vld [vmem:[%s5 + $0x38] sm:$0xff]
      %v2136 = vld [vmem:[%s5 + $0x40] sm:$0xff]
      %v2137 = vld [vmem:[%s5 + $0x48] sm:$0xff]
      %v2138 = vld [vmem:[%s5 + $0x50] sm:$0xff]
      %v2139 = vld [vmem:[%s5 + $0x58] sm:$0xff]
      %v2140 = vld [vmem:[%s5 + $0x60] sm:$0xff]
      %v2141 = vld [vmem:[%s5 + $0x68] sm:$0xff]
      %v2142 = vld [vmem:[%s5 + $0x70] sm:$0xff]
      %v2143 = vld [vmem:[%s5 + $0x78] sm:$0xff]
      %v2144 = vld [vmem:[%s5 + $0x80] sm:$0xff]
      %v2145 = vld [vmem:[%s5 + $0x88] sm:$0xff]
      %v2146 = vld [vmem:[%s5 + $0x90] sm:$0xff]
      %v2147 = vld [vmem:[%s5 + $0x98] sm:$0xff]
      %v2148 = vld [vmem:[%s5 + $0xa0] sm:$0xff]
      %v2149 = vld [vmem:[%s5 + $0xa8] sm:$0xff]
      %v2150 = vld [vmem:[%s5 + $0xb0] sm:$0xff]
      %v2151 = vld [vmem:[%s5 + $0xb8] sm:$0xff]
      %v2152 = vld [vmem:[%s5 + $0xc0] sm:$0xff]
      %v2153 = vld [vmem:[%s5 + $0xc8] sm:$0xff]
      %v2154 = vld [vmem:[%s5 + $0xd0] sm:$0xff]
      %v2155 = vld [vmem:[%s5 + $0xd8] sm:$0xff]
      %v2156 = vld [vmem:[%s5 + $0xe0] sm:$0xff]
      %v2157 = vld [vmem:[%s5 + $0xe8] sm:$0xff]
      %v2158 = vld [vmem:[%s5 + $0xf0] sm:$0xff]
      %v2159 = vld [vmem:[%s5 + $0xf8] sm:$0xff]
      %v2160 = vpack.c.bf16 %v2097, %v2096
      %v2161 = vpack.c.bf16 %v2099, %v2098
      %v2162 = vpack.c.bf16 %v2101, %v2100
      %v2163 = vpack.c.bf16 %v2103, %v2102
      %v2164 = vpack.c.bf16 %v2105, %v2104
      %v2165 = vpack.c.bf16 %v2107, %v2106
      %v2166 = vpack.c.bf16 %v2109, %v2108
      %v2167 = vpack.c.bf16 %v2111, %v2110
      %v2168 = vpack.c.bf16 %v2113, %v2112
      %v2169 = vpack.c.bf16 %v2115, %v2114
      %v2170 = vpack.c.bf16 %v2117, %v2116
      %v2171 = vpack.c.bf16 %v2119, %v2118
      %v2172 = vpack.c.bf16 %v2121, %v2120
      %v2173 = vpack.c.bf16 %v2123, %v2122
      %v2174 = vpack.c.bf16 %v2125, %v2124
      %v2175 = vpack.c.bf16 %v2127, %v2126
      %v2208 = vunpack.c.l.b16 %v2128
      %v2209 = vunpack.c.h.b16 %v2128
      %v2210 = vunpack.c.l.b16 %v2129
      %v2211 = vunpack.c.h.b16 %v2129
      %v2212 = vunpack.c.l.b16 %v2130
      %v2213 = vunpack.c.h.b16 %v2130
      %v2214 = vunpack.c.l.b16 %v2131
      %v2215 = vunpack.c.h.b16 %v2131
      %v2216 = vunpack.c.l.b16 %v2132
      %v2217 = vunpack.c.h.b16 %v2132
      %v2218 = vunpack.c.l.b16 %v2133
      %v2219 = vunpack.c.h.b16 %v2133
      %v2220 = vunpack.c.l.b16 %v2134
      %v2221 = vunpack.c.h.b16 %v2134
      %v2222 = vunpack.c.l.b16 %v2135
      %v2223 = vunpack.c.h.b16 %v2135
      %v2224 = vunpack.c.l.b16 %v2136
      %v2225 = vunpack.c.h.b16 %v2136
      %v2226 = vunpack.c.l.b16 %v2137
      %v2227 = vunpack.c.h.b16 %v2137
      %v2228 = vunpack.c.l.b16 %v2138
      %v2229 = vunpack.c.h.b16 %v2138
      %v2230 = vunpack.c.l.b16 %v2139
      %v2231 = vunpack.c.h.b16 %v2139
      %v2232 = vunpack.c.l.b16 %v2140
      %v2233 = vunpack.c.h.b16 %v2140
      %v2234 = vunpack.c.l.b16 %v2141
      %v2235 = vunpack.c.h.b16 %v2141
      %v2236 = vunpack.c.l.b16 %v2142
      %v2237 = vunpack.c.h.b16 %v2142
      %v2238 = vunpack.c.l.b16 %v2143
      %v2239 = vunpack.c.h.b16 %v2143
      %v2240 = vunpack.c.l.b16 %v2144
      %v2241 = vunpack.c.h.b16 %v2144
      %v2242 = vunpack.c.l.b16 %v2145
      %v2243 = vunpack.c.h.b16 %v2145
      %v2244 = vunpack.c.l.b16 %v2146
      %v2245 = vunpack.c.h.b16 %v2146
      %v2246 = vunpack.c.l.b16 %v2147
      %v2247 = vunpack.c.h.b16 %v2147
      %v2248 = vunpack.c.l.b16 %v2148
      %v2249 = vunpack.c.h.b16 %v2148
      %v2250 = vunpack.c.l.b16 %v2149
      %v2251 = vunpack.c.h.b16 %v2149
      %v2252 = vunpack.c.l.b16 %v2150
      %v2253 = vunpack.c.h.b16 %v2150
      %v2254 = vunpack.c.l.b16 %v2151
      %v2255 = vunpack.c.h.b16 %v2151
      %v2256 = vunpack.c.l.b16 %v2152
      %v2257 = vunpack.c.h.b16 %v2152
      %v2258 = vunpack.c.l.b16 %v2153
      %v2259 = vunpack.c.h.b16 %v2153
      %v2260 = vunpack.c.l.b16 %v2154
      %v2261 = vunpack.c.h.b16 %v2154
      %v2262 = vunpack.c.l.b16 %v2155
      %v2263 = vunpack.c.h.b16 %v2155
      %v2264 = vunpack.c.l.b16 %v2156
      %v2265 = vunpack.c.h.b16 %v2156
      %v2266 = vunpack.c.l.b16 %v2157
      %v2267 = vunpack.c.h.b16 %v2157
      %v2268 = vunpack.c.l.b16 %v2158
      %v2269 = vunpack.c.h.b16 %v2158
      %v2270 = vunpack.c.l.b16 %v2159
      %v2271 = vunpack.c.h.b16 %v2159
      %v2272 = vpack.c.b16 %v2210, %v2208
      %v2273 = vpack.c.b16 %v2211, %v2209
      %v2274 = vpack.c.b16 %v2214, %v2212
      %v2275 = vpack.c.b16 %v2215, %v2213
      %v2276 = vpack.c.b16 %v2218, %v2216
      %v2277 = vpack.c.b16 %v2219, %v2217
      %v2278 = vpack.c.b16 %v2222, %v2220
      %v2279 = vpack.c.b16 %v2223, %v2221
      %v2280 = vpack.c.b16 %v2226, %v2224
      %v2281 = vpack.c.b16 %v2227, %v2225
      %v2282 = vpack.c.b16 %v2230, %v2228
      %v2283 = vpack.c.b16 %v2231, %v2229
      %v2284 = vpack.c.b16 %v2234, %v2232
      %v2285 = vpack.c.b16 %v2235, %v2233
      %v2286 = vpack.c.b16 %v2238, %v2236
      %v2287 = vpack.c.b16 %v2239, %v2237
      %v2288 = vpack.c.b16 %v2242, %v2240
      %v2289 = vpack.c.b16 %v2243, %v2241
      %v2290 = vpack.c.b16 %v2246, %v2244
      %v2291 = vpack.c.b16 %v2247, %v2245
      %v2292 = vpack.c.b16 %v2250, %v2248
      %v2293 = vpack.c.b16 %v2251, %v2249
      %v2294 = vpack.c.b16 %v2254, %v2252
      %v2295 = vpack.c.b16 %v2255, %v2253
      %v2296 = vpack.c.b16 %v2258, %v2256
      %v2297 = vpack.c.b16 %v2259, %v2257
      %v2298 = vpack.c.b16 %v2262, %v2260
      %v2299 = vpack.c.b16 %v2263, %v2261
      %v2300 = vpack.c.b16 %v2266, %v2264
      %v2301 = vpack.c.b16 %v2267, %v2265
      %v2302 = vpack.c.b16 %v2270, %v2268
      %v2303 = vpack.c.b16 %v2271, %v2269
      %2336 = vrot.lane.b32.xlu0 %v273, 126
      %v2337 = vpop.permute.xlu0 %2336
      %2338 = vrot.lane.b32.xlu0 %v274, 126
      %v2339 = vpop.permute.xlu0 %2338
      %2340 = vrot.lane.b32.xlu0 %v275, 126
      %v2341 = vpop.permute.xlu0 %2340
      %2342 = vrot.lane.b32.xlu0 %v276, 126
      %v2343 = vpop.permute.xlu0 %2342
      %2344 = vrot.lane.b32.xlu0 %v277, 126
      %v2345 = vpop.permute.xlu0 %2344
      %2346 = vrot.lane.b32.xlu0 %v278, 126
      %v2347 = vpop.permute.xlu0 %2346
      %2348 = vrot.lane.b32.xlu0 %v279, 126
      %v2349 = vpop.permute.xlu0 %2348
      %2350 = vrot.lane.b32.xlu0 %v280, 126
      %v2351 = vpop.permute.xlu0 %2350
      %2352 = vrot.lane.b32.xlu0 %v281, 126
      %v2353 = vpop.permute.xlu0 %2352
      %2354 = vrot.lane.b32.xlu0 %v282, 126
      %v2355 = vpop.permute.xlu0 %2354
      %2356 = vrot.lane.b32.xlu0 %v283, 126
      %v2357 = vpop.permute.xlu0 %2356
      %2358 = vrot.lane.b32.xlu0 %v284, 126
      %v2359 = vpop.permute.xlu0 %2358
      %2360 = vrot.lane.b32.xlu0 %v285, 126
      %v2361 = vpop.permute.xlu0 %2360
      %2362 = vrot.lane.b32.xlu0 %v286, 126
      %v2363 = vpop.permute.xlu0 %2362
      %2364 = vrot.lane.b32.xlu0 %v287, 126
      %v2365 = vpop.permute.xlu0 %2364
      %2366 = vrot.lane.b32.xlu0 %v288, 126
      %v2367 = vpop.permute.xlu0 %2366
      %2368 = vrot.lane.b32.xlu0 %v289, 126
      %v2369 = vpop.permute.xlu0 %2368
      %2370 = vrot.lane.b32.xlu0 %v290, 126
      %v2371 = vpop.permute.xlu0 %2370
      %2372 = vrot.lane.b32.xlu0 %v291, 126
      %v2373 = vpop.permute.xlu0 %2372
      %2374 = vrot.lane.b32.xlu0 %v292, 126
      %v2375 = vpop.permute.xlu0 %2374
      %2376 = vrot.lane.b32.xlu0 %v293, 126
      %v2377 = vpop.permute.xlu0 %2376
      %2378 = vrot.lane.b32.xlu0 %v294, 126
      %v2379 = vpop.permute.xlu0 %2378
      %2380 = vrot.lane.b32.xlu0 %v295, 126
      %v2381 = vpop.permute.xlu0 %2380
      %2382 = vrot.lane.b32.xlu0 %v296, 126
      %v2383 = vpop.permute.xlu0 %2382
      %2384 = vrot.lane.b32.xlu0 %v297, 126
      %v2385 = vpop.permute.xlu0 %2384
      %2386 = vrot.lane.b32.xlu0 %v298, 126
      %v2387 = vpop.permute.xlu0 %2386
      %2388 = vrot.lane.b32.xlu0 %v299, 126
      %v2389 = vpop.permute.xlu0 %2388
      %2390 = vrot.lane.b32.xlu0 %v300, 126
      %v2391 = vpop.permute.xlu0 %2390
      %2392 = vrot.lane.b32.xlu0 %v301, 126
      %v2393 = vpop.permute.xlu0 %2392
      %2394 = vrot.lane.b32.xlu0 %v302, 126
      %v2395 = vpop.permute.xlu0 %2394
      %2396 = vrot.lane.b32.xlu0 %v303, 126
      %v2397 = vpop.permute.xlu0 %2396
      %2398 = vrot.lane.b32.xlu0 %v304, 126
      %v2399 = vpop.permute.xlu0 %2398
      %2432 = vmatprep.subr.bf16.mxu0 0
      %2433 = vmatpush1.bf16.msra.mxu0 %v2160
      %2434 = vmatprep.subr.bf16.mxu0 0
      %2435 = vmatpush1.bf16.msra.mxu0 %v2161
      %2436 = vmatprep.subr.bf16.mxu0 0
      %2437 = vmatpush1.bf16.msra.mxu0 %v2162
      %2438 = vmatprep.subr.bf16.mxu0 0
      %2439 = vmatpush1.bf16.msra.mxu0 %v2163
      %2440 = vmatprep.subr.bf16.mxu0 0
      %2441 = vmatpush1.bf16.msra.mxu0 %v2164
      %2442 = vmatprep.subr.bf16.mxu0 0
      %2443 = vmatpush1.bf16.msra.mxu0 %v2165
      %2444 = vmatprep.subr.bf16.mxu0 0
      %2445 = vmatpush1.bf16.msra.mxu0 %v2166
      %2446 = vmatprep.subr.bf16.mxu0 0
      %2447 = vmatpush1.bf16.msra.mxu0 %v2167
      %2448 = vmatprep.subr.bf16.mxu0 0
      %2449 = vmatpush1.bf16.msra.mxu0 %v2168
      %2450 = vmatprep.subr.bf16.mxu0 0
      %2451 = vmatpush1.bf16.msra.mxu0 %v2169
      %2452 = vmatprep.subr.bf16.mxu0 0
      %2453 = vmatpush1.bf16.msra.mxu0 %v2170
      %2454 = vmatprep.subr.bf16.mxu0 0
      %2455 = vmatpush1.bf16.msra.mxu0 %v2171
      %2456 = vmatprep.subr.bf16.mxu0 0
      %2457 = vmatpush1.bf16.msra.mxu0 %v2172
      %2458 = vmatprep.subr.bf16.mxu0 0
      %2459 = vmatpush1.bf16.msra.mxu0 %v2173
      %2460 = vmatprep.subr.bf16.mxu0 0
      %2461 = vmatpush1.bf16.msra.mxu0 %v2174
      %2462 = vmatprep.subr.bf16.mxu0 0
      %2463 = vmatpush1.bf16.msra.mxu0 %v2175
      %2464 = vmatprep.mubr.bf16.mxu0 %v2273
      %2465 = vmatmul.mubr.bf16.gmra.mrb[0].mxu0 %v2272
      %v2466 = vpop.f32.mrb[0].mxu0
      %v2467 = vadd.f32 %v2337, %v2466
      %v2468 = vpop.f32.mrb[0].mxu0
      %v2469 = vpop.f32.mrb[0].mxu0
      %v2470 = vadd.f32 %v2339, %v2469
      %v2471 = vpop.f32.mrb[0].mxu0
      %2472 = vmatprep.mubr.bf16.mxu0 %v2275
      %2473 = vmatmul.mubr.bf16.gmra.mrb[0].mxu0 %v2274
      %v2474 = vpop.f32.mrb[0].mxu0
      %v2475 = vadd.f32 %v2341, %v2474
      %v2476 = vpop.f32.mrb[0].mxu0
      %v2477 = vpop.f32.mrb[0].mxu0
      %v2478 = vadd.f32 %v2343, %v2477
      %v2479 = vpop.f32.mrb[0].mxu0
      %2480 = vmatprep.mubr.bf16.mxu0 %v2277
      %2481 = vmatmul.mubr.bf16.gmra.mrb[0].mxu0 %v2276
      %v2482 = vpop.f32.mrb[0].mxu0
      %v2483 = vadd.f32 %v2345, %v2482
      %v2484 = vpop.f32.mrb[0].mxu0
      %v2485 = vpop.f32.mrb[0].mxu0
      %v2486 = vadd.f32 %v2347, %v2485
      %v2487 = vpop.f32.mrb[0].mxu0
      %2488 = vmatprep.mubr.bf16.mxu0 %v2279
      %2489 = vmatmul.mubr.bf16.gmra.mrb[0].mxu0 %v2278
      %v2490 = vpop.f32.mrb[0].mxu0
      %v2491 = vadd.f32 %v2349, %v2490
      %v2492 = vpop.f32.mrb[0].mxu0
      %v2493 = vpop.f32.mrb[0].mxu0
      %v2494 = vadd.f32 %v2351, %v2493
      %v2495 = vpop.f32.mrb[0].mxu0
      %2496 = vmatprep.mubr.bf16.mxu0 %v2281
      %2497 = vmatmul.mubr.bf16.gmra.mrb[0].mxu0 %v2280
      %v2498 = vpop.f32.mrb[0].mxu0
      %v2499 = vadd.f32 %v2353, %v2498
      %v2500 = vpop.f32.mrb[0].mxu0
      %v2501 = vpop.f32.mrb[0].mxu0
      %v2502 = vadd.f32 %v2355, %v2501
      %v2503 = vpop.f32.mrb[0].mxu0
      %2504 = vmatprep.mubr.bf16.mxu0 %v2283
      %2505 = vmatmul.mubr.bf16.gmra.mrb[0].mxu0 %v2282
      %v2506 = vpop.f32.mrb[0].mxu0
      %v2507 = vadd.f32 %v2357, %v2506
      %v2508 = vpop.f32.mrb[0].mxu0
      %v2509 = vpop.f32.mrb[0].mxu0
      %v2510 = vadd.f32 %v2359, %v2509
      %v2511 = vpop.f32.mrb[0].mxu0
      %2512 = vmatprep.mubr.bf16.mxu0 %v2285
      %2513 = vmatmul.mubr.bf16.gmra.mrb[0].mxu0 %v2284
      %v2514 = vpop.f32.mrb[0].mxu0
      %v2515 = vadd.f32 %v2361, %v2514
      %v2516 = vpop.f32.mrb[0].mxu0
      %v2517 = vpop.f32.mrb[0].mxu0
      %v2518 = vadd.f32 %v2363, %v2517
      %v2519 = vpop.f32.mrb[0].mxu0
      %2520 = vmatprep.mubr.bf16.mxu0 %v2287
      %2521 = vmatmul.mubr.bf16.gmra.mrb[0].mxu0 %v2286
      %v2522 = vpop.f32.mrb[0].mxu0
      %v2523 = vadd.f32 %v2365, %v2522
      %v2524 = vpop.f32.mrb[0].mxu0
      %v2525 = vpop.f32.mrb[0].mxu0
      %v2526 = vadd.f32 %v2367, %v2525
      %v2527 = vpop.f32.mrb[0].mxu0
      %2528 = vmatprep.mubr.bf16.mxu0 %v2289
      %2529 = vmatmul.mubr.bf16.gmra.mrb[0].mxu0 %v2288
      %v2530 = vpop.f32.mrb[0].mxu0
      %v2531 = vadd.f32 %v2369, %v2530
      %v2532 = vpop.f32.mrb[0].mxu0
      %v2533 = vpop.f32.mrb[0].mxu0
      %v2534 = vadd.f32 %v2371, %v2533
      %v2535 = vpop.f32.mrb[0].mxu0
      %2536 = vmatprep.mubr.bf16.mxu0 %v2291
      %2537 = vmatmul.mubr.bf16.gmra.mrb[0].mxu0 %v2290
      %v2538 = vpop.f32.mrb[0].mxu0
      %v2539 = vadd.f32 %v2373, %v2538
      %v2540 = vpop.f32.mrb[0].mxu0
      %v2541 = vpop.f32.mrb[0].mxu0
      %v2542 = vadd.f32 %v2375, %v2541
      %v2543 = vpop.f32.mrb[0].mxu0
      %2544 = vmatprep.mubr.bf16.mxu0 %v2293
      %2545 = vmatmul.mubr.bf16.gmra.mrb[0].mxu0 %v2292
      %v2546 = vpop.f32.mrb[0].mxu0
      %v2547 = vadd.f32 %v2377, %v2546
      %v2548 = vpop.f32.mrb[0].mxu0
      %v2549 = vpop.f32.mrb[0].mxu0
      %v2550 = vadd.f32 %v2379, %v2549
      %v2551 = vpop.f32.mrb[0].mxu0
      %2552 = vmatprep.mubr.bf16.mxu0 %v2295
      %2553 = vmatmul.mubr.bf16.gmra.mrb[0].mxu0 %v2294
      %v2554 = vpop.f32.mrb[0].mxu0
      %v2555 = vadd.f32 %v2381, %v2554
      %v2556 = vpop.f32.mrb[0].mxu0
      %v2557 = vpop.f32.mrb[0].mxu0
      %v2558 = vadd.f32 %v2383, %v2557
      %v2559 = vpop.f32.mrb[0].mxu0
      %2560 = vmatprep.mubr.bf16.mxu0 %v2297
      %2561 = vmatmul.mubr.bf16.gmra.mrb[0].mxu0 %v2296
      %v2562 = vpop.f32.mrb[0].mxu0
      %v2563 = vadd.f32 %v2385, %v2562
      %v2564 = vpop.f32.mrb[0].mxu0
      %v2565 = vpop.f32.mrb[0].mxu0
      %v2566 = vadd.f32 %v2387, %v2565
      %v2567 = vpop.f32.mrb[0].mxu0
      %2568 = vmatprep.mubr.bf16.mxu0 %v2299
      %2569 = vmatmul.mubr.bf16.gmra.mrb[0].mxu0 %v2298
      %v2570 = vpop.f32.mrb[0].mxu0
      %v2571 = vadd.f32 %v2389, %v2570
      %v2572 = vpop.f32.mrb[0].mxu0
      %v2573 = vpop.f32.mrb[0].mxu0
      %v2574 = vadd.f32 %v2391, %v2573
      %v2575 = vpop.f32.mrb[0].mxu0
      %2576 = vmatprep.mubr.bf16.mxu0 %v2301
      %2577 = vmatmul.mubr.bf16.gmra.mrb[0].mxu0 %v2300
      %v2578 = vpop.f32.mrb[0].mxu0
      %v2579 = vadd.f32 %v2393, %v2578
      %v2580 = vpop.f32.mrb[0].mxu0
      %v2581 = vpop.f32.mrb[0].mxu0
      %v2582 = vadd.f32 %v2395, %v2581
      %v2583 = vpop.f32.mrb[0].mxu0
      %2584 = vmatprep.mubr.bf16.mxu0 %v2303
      %2585 = vmatmul.mubr.bf16.gmra.mrb[0].mxu0 %v2302
      %v2586 = vpop.f32.mrb[0].mxu0
      %v2587 = vadd.f32 %v2397, %v2586
      %v2588 = vpop.f32.mrb[0].mxu0
      %v2589 = vpop.f32.mrb[0].mxu0
      %v2590 = vadd.f32 %v2399, %v2589
      %v2591 = vpop.f32.mrb[0].mxu0
      %2592 = vdwg.mxu0
      %v2593 = vxor.u32 %v2467, 2147483648
      %v2594 = vxor.u32 %v2470, 2147483648
      %v2595 = vxor.u32 %v2475, 2147483648
      %v2596 = vxor.u32 %v2478, 2147483648
      %v2597 = vxor.u32 %v2483, 2147483648
      %v2598 = vxor.u32 %v2486, 2147483648
      %v2599 = vxor.u32 %v2491, 2147483648
      %v2600 = vxor.u32 %v2494, 2147483648
      %v2601 = vxor.u32 %v2499, 2147483648
      %v2602 = vxor.u32 %v2502, 2147483648
      %v2603 = vxor.u32 %v2507, 2147483648
      %v2604 = vxor.u32 %v2510, 2147483648
      %v2605 = vxor.u32 %v2515, 2147483648
      %v2606 = vxor.u32 %v2518, 2147483648
      %v2607 = vxor.u32 %v2523, 2147483648
      %v2608 = vxor.u32 %v2526, 2147483648
      %v2609 = vxor.u32 %v2531, 2147483648
      %v2610 = vxor.u32 %v2534, 2147483648
      %v2611 = vxor.u32 %v2539, 2147483648
      %v2612 = vxor.u32 %v2542, 2147483648
      %v2613 = vxor.u32 %v2547, 2147483648
      %v2614 = vxor.u32 %v2550, 2147483648
      %v2615 = vxor.u32 %v2555, 2147483648
      %v2616 = vxor.u32 %v2558, 2147483648
      %v2617 = vxor.u32 %v2563, 2147483648
      %v2618 = vxor.u32 %v2566, 2147483648
      %v2619 = vxor.u32 %v2571, 2147483648
      %v2620 = vxor.u32 %v2574, 2147483648
      %v2621 = vxor.u32 %v2579, 2147483648
      %v2622 = vxor.u32 %v2582, 2147483648
      %v2623 = vxor.u32 %v2587, 2147483648
      %v2624 = vxor.u32 %v2590, 2147483648
      %v2625 = vmul.f32 %v2593, 1.442695
      %v2626 = vpow.pop %v2625
      %v2627 = vmul.f32 %v2594, 1.442695
      %v2628 = vpow.pop %v2627
      %v2629 = vmul.f32 %v2595, 1.442695
      %v2630 = vpow.pop %v2629
      %v2631 = vmul.f32 %v2596, 1.442695
      %v2632 = vpow.pop %v2631
      %v2633 = vmul.f32 %v2597, 1.442695
      %v2634 = vpow.pop %v2633
      %v2635 = vmul.f32 %v2598, 1.442695
      %v2636 = vpow.pop %v2635
      %v2637 = vmul.f32 %v2599, 1.442695
      %v2638 = vpow.pop %v2637
      %v2639 = vmul.f32 %v2600, 1.442695
      %v2640 = vpow.pop %v2639
      %v2641 = vmul.f32 %v2601, 1.442695
      %v2642 = vpow.pop %v2641
      %v2643 = vmul.f32 %v2602, 1.442695
      %v2644 = vpow.pop %v2643
      %v2645 = vmul.f32 %v2603, 1.442695
      %v2646 = vpow.pop %v2645
      %v2647 = vmul.f32 %v2604, 1.442695
      %v2648 = vpow.pop %v2647
      %v2649 = vmul.f32 %v2605, 1.442695
      %v2650 = vpow.pop %v2649
      %v2651 = vmul.f32 %v2606, 1.442695
      %v2652 = vpow.pop %v2651
      %v2653 = vmul.f32 %v2607, 1.442695
      %v2654 = vpow.pop %v2653
      %v2655 = vmul.f32 %v2608, 1.442695
      %v2656 = vpow.pop %v2655
      %v2657 = vmul.f32 %v2609, 1.442695
      %v2658 = vpow.pop %v2657
      %v2659 = vmul.f32 %v2610, 1.442695
      %v2660 = vpow.pop %v2659
      %v2661 = vmul.f32 %v2611, 1.442695
      %v2662 = vpow.pop %v2661
      %v2663 = vmul.f32 %v2612, 1.442695
      %v2664 = vpow.pop %v2663
      %v2665 = vmul.f32 %v2613, 1.442695
      %v2666 = vpow.pop %v2665
      %v2667 = vmul.f32 %v2614, 1.442695
      %v2668 = vpow.pop %v2667
      %v2669 = vmul.f32 %v2615, 1.442695
      %v2670 = vpow.pop %v2669
      %v2671 = vmul.f32 %v2616, 1.442695
      %v2672 = vpow.pop %v2671
      %v2673 = vmul.f32 %v2617, 1.442695
      %v2674 = vpow.pop %v2673
      %v2675 = vmul.f32 %v2618, 1.442695
      %v2676 = vpow.pop %v2675
      %v2677 = vmul.f32 %v2619, 1.442695
      %v2678 = vpow.pop %v2677
      %v2679 = vmul.f32 %v2620, 1.442695
      %v2680 = vpow.pop %v2679
      %v2681 = vmul.f32 %v2621, 1.442695
      %v2682 = vpow.pop %v2681
      %v2683 = vmul.f32 %v2622, 1.442695
      %v2684 = vpow.pop %v2683
      %v2685 = vmul.f32 %v2623, 1.442695
      %v2686 = vpow.pop %v2685
      %v2687 = vmul.f32 %v2624, 1.442695
      %v2688 = vpow.pop %v2687
      %v2689 = vadd.f32 %v2626, 1.0
      %v2690 = vadd.f32 %v2628, 1.0
      %v2691 = vadd.f32 %v2630, 1.0
      %v2692 = vadd.f32 %v2632, 1.0
      %v2693 = vadd.f32 %v2634, 1.0
      %v2694 = vadd.f32 %v2636, 1.0
      %v2695 = vadd.f32 %v2638, 1.0
      %v2696 = vadd.f32 %v2640, 1.0
      %v2697 = vadd.f32 %v2642, 1.0
      %v2698 = vadd.f32 %v2644, 1.0
      %v2699 = vadd.f32 %v2646, 1.0
      %v2700 = vadd.f32 %v2648, 1.0
      %v2701 = vadd.f32 %v2650, 1.0
      %v2702 = vadd.f32 %v2652, 1.0
      %v2703 = vadd.f32 %v2654, 1.0
      %v2704 = vadd.f32 %v2656, 1.0
      %v2705 = vadd.f32 %v2658, 1.0
      %v2706 = vadd.f32 %v2660, 1.0
      %v2707 = vadd.f32 %v2662, 1.0
      %v2708 = vadd.f32 %v2664, 1.0
      %v2709 = vadd.f32 %v2666, 1.0
      %v2710 = vadd.f32 %v2668, 1.0
      %v2711 = vadd.f32 %v2670, 1.0
      %v2712 = vadd.f32 %v2672, 1.0
      %v2713 = vadd.f32 %v2674, 1.0
      %v2714 = vadd.f32 %v2676, 1.0
      %v2715 = vadd.f32 %v2678, 1.0
      %v2716 = vadd.f32 %v2680, 1.0
      %v2717 = vadd.f32 %v2682, 1.0
      %v2718 = vadd.f32 %v2684, 1.0
      %v2719 = vadd.f32 %v2686, 1.0
      %v2720 = vadd.f32 %v2688, 1.0
      %v2721 = vrcp.pop %v2689
      %v2722 = vmul.f32 1.0, %v2721
      %v2723 = vrcp.pop %v2690
      %v2724 = vmul.f32 1.0, %v2723
      %v2725 = vrcp.pop %v2691
      %v2726 = vmul.f32 1.0, %v2725
      %v2727 = vrcp.pop %v2692
      %v2728 = vmul.f32 1.0, %v2727
      %v2729 = vrcp.pop %v2693
      %v2730 = vmul.f32 1.0, %v2729
      %v2731 = vrcp.pop %v2694
      %v2732 = vmul.f32 1.0, %v2731
      %v2733 = vrcp.pop %v2695
      %v2734 = vmul.f32 1.0, %v2733
      %v2735 = vrcp.pop %v2696
      %v2736 = vmul.f32 1.0, %v2735
      %v2737 = vrcp.pop %v2697
      %v2738 = vmul.f32 1.0, %v2737
      %v2739 = vrcp.pop %v2698
      %v2740 = vmul.f32 1.0, %v2739
      %v2741 = vrcp.pop %v2699
      %v2742 = vmul.f32 1.0, %v2741
      %v2743 = vrcp.pop %v2700
      %v2744 = vmul.f32 1.0, %v2743
      %v2745 = vrcp.pop %v2701
      %v2746 = vmul.f32 1.0, %v2745
      %v2747 = vrcp.pop %v2702
      %v2748 = vmul.f32 1.0, %v2747
      %v2749 = vrcp.pop %v2703
      %v2750 = vmul.f32 1.0, %v2749
      %v2751 = vrcp.pop %v2704
      %v2752 = vmul.f32 1.0, %v2751
      %v2753 = vrcp.pop %v2705
      %v2754 = vmul.f32 1.0, %v2753
      %v2755 = vrcp.pop %v2706
      %v2756 = vmul.f32 1.0, %v2755
      %v2757 = vrcp.pop %v2707
      %v2758 = vmul.f32 1.0, %v2757
      %v2759 = vrcp.pop %v2708
      %v2760 = vmul.f32 1.0, %v2759
      %v2761 = vrcp.pop %v2709
      %v2762 = vmul.f32 1.0, %v2761
      %v2763 = vrcp.pop %v2710
      %v2764 = vmul.f32 1.0, %v2763
      %v2765 = vrcp.pop %v2711
      %v2766 = vmul.f32 1.0, %v2765
      %v2767 = vrcp.pop %v2712
      %v2768 = vmul.f32 1.0, %v2767
      %v2769 = vrcp.pop %v2713
      %v2770 = vmul.f32 1.0, %v2769
      %v2771 = vrcp.pop %v2714
      %v2772 = vmul.f32 1.0, %v2771
      %v2773 = vrcp.pop %v2715
      %v2774 = vmul.f32 1.0, %v2773
      %v2775 = vrcp.pop %v2716
      %v2776 = vmul.f32 1.0, %v2775
      %v2777 = vrcp.pop %v2717
      %v2778 = vmul.f32 1.0, %v2777
      %v2779 = vrcp.pop %v2718
      %v2780 = vmul.f32 1.0, %v2779
      %v2781 = vrcp.pop %v2719
      %v2782 = vmul.f32 1.0, %v2781
      %v2783 = vrcp.pop %v2720
      %v2784 = vmul.f32 1.0, %v2783
      %2786 = vset.pattern.permute.xlu0 0
      %2787 = vperm.xlu0 %2786, %v2722
      %v2788 = vpop.permute.xlu0 %2787
      %2791 = vset.pattern.permute.xlu0 0
      %2792 = vperm.xlu0 %2791, %v2724
      %v2793 = vpop.permute.xlu0 %2792
      %2796 = vset.pattern.permute.xlu0 0
      %2797 = vperm.xlu0 %2796, %v2726
      %v2798 = vpop.permute.xlu0 %2797
      %2801 = vset.pattern.permute.xlu0 0
      %2802 = vperm.xlu0 %2801, %v2728
      %v2803 = vpop.permute.xlu0 %2802
      %2806 = vset.pattern.permute.xlu0 0
      %2807 = vperm.xlu0 %2806, %v2730
      %v2808 = vpop.permute.xlu0 %2807
      %2811 = vset.pattern.permute.xlu0 0
      %2812 = vperm.xlu0 %2811, %v2732
      %v2813 = vpop.permute.xlu0 %2812
      %2816 = vset.pattern.permute.xlu0 0
      %2817 = vperm.xlu0 %2816, %v2734
      %v2818 = vpop.permute.xlu0 %2817
      %2821 = vset.pattern.permute.xlu0 0
      %2822 = vperm.xlu0 %2821, %v2736
      %v2823 = vpop.permute.xlu0 %2822
      %2826 = vset.pattern.permute.xlu0 0
      %2827 = vperm.xlu0 %2826, %v2738
      %v2828 = vpop.permute.xlu0 %2827
      %2831 = vset.pattern.permute.xlu0 0
      %2832 = vperm.xlu0 %2831, %v2740
      %v2833 = vpop.permute.xlu0 %2832
      %2836 = vset.pattern.permute.xlu0 0
      %2837 = vperm.xlu0 %2836, %v2742
      %v2838 = vpop.permute.xlu0 %2837
      %2841 = vset.pattern.permute.xlu0 0
      %2842 = vperm.xlu0 %2841, %v2744
      %v2843 = vpop.permute.xlu0 %2842
      %2846 = vset.pattern.permute.xlu0 0
      %2847 = vperm.xlu0 %2846, %v2746
      %v2848 = vpop.permute.xlu0 %2847
      %2851 = vset.pattern.permute.xlu0 0
      %2852 = vperm.xlu0 %2851, %v2748
      %v2853 = vpop.permute.xlu0 %2852
      %2856 = vset.pattern.permute.xlu0 0
      %2857 = vperm.xlu0 %2856, %v2750
      %v2858 = vpop.permute.xlu0 %2857
      %2861 = vset.pattern.permute.xlu0 0
      %2862 = vperm.xlu0 %2861, %v2752
      %v2863 = vpop.permute.xlu0 %2862
      %2866 = vset.pattern.permute.xlu0 0
      %2867 = vperm.xlu0 %2866, %v2754
      %v2868 = vpop.permute.xlu0 %2867
      %2871 = vset.pattern.permute.xlu0 0
      %2872 = vperm.xlu0 %2871, %v2756
      %v2873 = vpop.permute.xlu0 %2872
      %2876 = vset.pattern.permute.xlu0 0
      %2877 = vperm.xlu0 %2876, %v2758
      %v2878 = vpop.permute.xlu0 %2877
      %2881 = vset.pattern.permute.xlu0 0
      %2882 = vperm.xlu0 %2881, %v2760
      %v2883 = vpop.permute.xlu0 %2882
      %2886 = vset.pattern.permute.xlu0 0
      %2887 = vperm.xlu0 %2886, %v2762
      %v2888 = vpop.permute.xlu0 %2887
      %2891 = vset.pattern.permute.xlu0 0
      %2892 = vperm.xlu0 %2891, %v2764
      %v2893 = vpop.permute.xlu0 %2892
      %2896 = vset.pattern.permute.xlu0 0
      %2897 = vperm.xlu0 %2896, %v2766
      %v2898 = vpop.permute.xlu0 %2897
      %2901 = vset.pattern.permute.xlu0 0
      %2902 = vperm.xlu0 %2901, %v2768
      %v2903 = vpop.permute.xlu0 %2902
      %2906 = vset.pattern.permute.xlu0 0
      %2907 = vperm.xlu0 %2906, %v2770
      %v2908 = vpop.permute.xlu0 %2907
      %2911 = vset.pattern.permute.xlu0 0
      %2912 = vperm.xlu0 %2911, %v2772
      %v2913 = vpop.permute.xlu0 %2912
      %2916 = vset.pattern.permute.xlu0 0
      %2917 = vperm.xlu0 %2916, %v2774
      %v2918 = vpop.permute.xlu0 %2917
      %2921 = vset.pattern.permute.xlu0 0
      %2922 = vperm.xlu0 %2921, %v2776
      %v2923 = vpop.permute.xlu0 %2922
      %2926 = vset.pattern.permute.xlu0 0
      %2927 = vperm.xlu0 %2926, %v2778
      %v2928 = vpop.permute.xlu0 %2927
      %2931 = vset.pattern.permute.xlu0 0
      %2932 = vperm.xlu0 %2931, %v2780
      %v2933 = vpop.permute.xlu0 %2932
      %2936 = vset.pattern.permute.xlu0 0
      %2937 = vperm.xlu0 %2936, %v2782
      %v2938 = vpop.permute.xlu0 %2937
      %2941 = vset.pattern.permute.xlu0 0
      %2942 = vperm.xlu0 %2941, %v2784
      %v2943 = vpop.permute.xlu0 %2942
      %v2945 = vmul.f32 %v1438, %v2788
      %v2946 = vmul.f32 %v1439, %v2788
      %v2947 = vmul.f32 %v1440, %v2793
      %v2948 = vmul.f32 %v1441, %v2793
      %v2949 = vmul.f32 %v1442, %v2798
      %v2950 = vmul.f32 %v1443, %v2798
      %v2951 = vmul.f32 %v1444, %v2803
      %v2952 = vmul.f32 %v1445, %v2803
      %v2953 = vmul.f32 %v1446, %v2808
      %v2954 = vmul.f32 %v1447, %v2808
      %v2955 = vmul.f32 %v1448, %v2813
      %v2956 = vmul.f32 %v1449, %v2813
      %v2957 = vmul.f32 %v1450, %v2818
      %v2958 = vmul.f32 %v1451, %v2818
      %v2959 = vmul.f32 %v1452, %v2823
      %v2960 = vmul.f32 %v1453, %v2823
      %v2961 = vmul.f32 %v1454, %v2828
      %v2962 = vmul.f32 %v1455, %v2828
      %v2963 = vmul.f32 %v1456, %v2833
      %v2964 = vmul.f32 %v1457, %v2833
      %v2965 = vmul.f32 %v1458, %v2838
      %v2966 = vmul.f32 %v1459, %v2838
      %v2967 = vmul.f32 %v1460, %v2843
      %v2968 = vmul.f32 %v1461, %v2843
      %v2969 = vmul.f32 %v1462, %v2848
      %v2970 = vmul.f32 %v1463, %v2848
      %v2971 = vmul.f32 %v1464, %v2853
      %v2972 = vmul.f32 %v1465, %v2853
      %v2973 = vmul.f32 %v1466, %v2858
      %v2974 = vmul.f32 %v1467, %v2858
      %v2975 = vmul.f32 %v1468, %v2863
      %v2976 = vmul.f32 %v1469, %v2863
      %v2977 = vmul.f32 %v1470, %v2868
      %v2978 = vmul.f32 %v1471, %v2868
      %v2979 = vmul.f32 %v1472, %v2873
      %v2980 = vmul.f32 %v1473, %v2873
      %v2981 = vmul.f32 %v1474, %v2878
      %v2982 = vmul.f32 %v1475, %v2878
      %v2983 = vmul.f32 %v1476, %v2883
      %v2984 = vmul.f32 %v1477, %v2883
      %v2985 = vmul.f32 %v1478, %v2888
      %v2986 = vmul.f32 %v1479, %v2888
      %v2987 = vmul.f32 %v1480, %v2893
      %v2988 = vmul.f32 %v1481, %v2893
      %v2989 = vmul.f32 %v1482, %v2898
      %v2990 = vmul.f32 %v1483, %v2898
      %v2991 = vmul.f32 %v1484, %v2903
      %v2992 = vmul.f32 %v1485, %v2903
      %v2993 = vmul.f32 %v1486, %v2908
      %v2994 = vmul.f32 %v1487, %v2908
      %v2995 = vmul.f32 %v1488, %v2913
      %v2996 = vmul.f32 %v1489, %v2913
      %v2997 = vmul.f32 %v1490, %v2918
      %v2998 = vmul.f32 %v1491, %v2918
      %v2999 = vmul.f32 %v1492, %v2923
      %v3000 = vmul.f32 %v1493, %v2923
      %v3001 = vmul.f32 %v1494, %v2928
      %v3002 = vmul.f32 %v1495, %v2928
      %v3003 = vmul.f32 %v1496, %v2933
      %v3004 = vmul.f32 %v1497, %v2933
      %v3005 = vmul.f32 %v1498, %v2938
      %v3006 = vmul.f32 %v1499, %v2938
      %v3007 = vmul.f32 %v1500, %v2943
      %v3008 = vmul.f32 %v1501, %v2943
      %3009 = vst [vmem:[%s271] sm:$0xff] %v2945
      %3010 = vst [vmem:[%s271 + $0x8] sm:$0xff] %v2946
      %3011 = vst [vmem:[%s271 + $0x10] sm:$0xff] %v2947
      %3012 = vst [vmem:[%s271 + $0x18] sm:$0xff] %v2948
      %3013 = vst [vmem:[%s271 + $0x20] sm:$0xff] %v2949
      %3014 = vst [vmem:[%s271 + $0x28] sm:$0xff] %v2950
      %3015 = vst [vmem:[%s271 + $0x30] sm:$0xff] %v2951
      %3016 = vst [vmem:[%s271 + $0x38] sm:$0xff] %v2952
      %3017 = vst [vmem:[%s271 + $0x40] sm:$0xff] %v2953
      %3018 = vst [vmem:[%s271 + $0x48] sm:$0xff] %v2954
      %3019 = vst [vmem:[%s271 + $0x50] sm:$0xff] %v2955
      %3020 = vst [vmem:[%s271 + $0x58] sm:$0xff] %v2956
      %3021 = vst [vmem:[%s271 + $0x60] sm:$0xff] %v2957
      %3022 = vst [vmem:[%s271 + $0x68] sm:$0xff] %v2958
      %3023 = vst [vmem:[%s271 + $0x70] sm:$0xff] %v2959
      %3024 = vst [vmem:[%s271 + $0x78] sm:$0xff] %v2960
      %3025 = vst [vmem:[%s271 + $0x80] sm:$0xff] %v2961
      %3026 = vst [vmem:[%s271 + $0x88] sm:$0xff] %v2962
      %3027 = vst [vmem:[%s271 + $0x90] sm:$0xff] %v2963
      %3028 = vst [vmem:[%s271 + $0x98] sm:$0xff] %v2964
      %3029 = vst [vmem:[%s271 + $0xa0] sm:$0xff] %v2965
      %3030 = vst [vmem:[%s271 + $0xa8] sm:$0xff] %v2966
      %3031 = vst [vmem:[%s271 + $0xb0] sm:$0xff] %v2967
      %3032 = vst [vmem:[%s271 + $0xb8] sm:$0xff] %v2968
      %3033 = vst [vmem:[%s271 + $0xc0] sm:$0xff] %v2969
      %3034 = vst [vmem:[%s271 + $0xc8] sm:$0xff] %v2970
      %3035 = vst [vmem:[%s271 + $0xd0] sm:$0xff] %v2971
      %3036 = vst [vmem:[%s271 + $0xd8] sm:$0xff] %v2972
      %3037 = vst [vmem:[%s271 + $0xe0] sm:$0xff] %v2973
      %3038 = vst [vmem:[%s271 + $0xe8] sm:$0xff] %v2974
      %3039 = vst [vmem:[%s271 + $0xf0] sm:$0xff] %v2975
      %3040 = vst [vmem:[%s271 + $0xf8] sm:$0xff] %v2976
      %3041 = vst [vmem:[%s271 + $0x100] sm:$0xff] %v2977
      %3042 = vst [vmem:[%s271 + $0x108] sm:$0xff] %v2978
      %3043 = vst [vmem:[%s271 + $0x110] sm:$0xff] %v2979
      %3044 = vst [vmem:[%s271 + $0x118] sm:$0xff] %v2980
      %3045 = vst [vmem:[%s271 + $0x120] sm:$0xff] %v2981
      %3046 = vst [vmem:[%s271 + $0x128] sm:$0xff] %v2982
      %3047 = vst [vmem:[%s271 + $0x130] sm:$0xff] %v2983
      %3048 = vst [vmem:[%s271 + $0x138] sm:$0xff] %v2984
      %3049 = vst [vmem:[%s271 + $0x140] sm:$0xff] %v2985
      %3050 = vst [vmem:[%s271 + $0x148] sm:$0xff] %v2986
      %3051 = vst [vmem:[%s271 + $0x150] sm:$0xff] %v2987
      %3052 = vst [vmem:[%s271 + $0x158] sm:$0xff] %v2988
      %3053 = vst [vmem:[%s271 + $0x160] sm:$0xff] %v2989
      %3054 = vst [vmem:[%s271 + $0x168] sm:$0xff] %v2990
      %3055 = vst [vmem:[%s271 + $0x170] sm:$0xff] %v2991
      %3056 = vst [vmem:[%s271 + $0x178] sm:$0xff] %v2992
      %3057 = vst [vmem:[%s271 + $0x180] sm:$0xff] %v2993
      %3058 = vst [vmem:[%s271 + $0x188] sm:$0xff] %v2994
      %3059 = vst [vmem:[%s271 + $0x190] sm:$0xff] %v2995
      %3060 = vst [vmem:[%s271 + $0x198] sm:$0xff] %v2996
      %3061 = vst [vmem:[%s271 + $0x1a0] sm:$0xff] %v2997
      %3062 = vst [vmem:[%s271 + $0x1a8] sm:$0xff] %v2998
      %3063 = vst [vmem:[%s271 + $0x1b0] sm:$0xff] %v2999
      %3064 = vst [vmem:[%s271 + $0x1b8] sm:$0xff] %v3000
      %3065 = vst [vmem:[%s271 + $0x1c0] sm:$0xff] %v3001
      %3066 = vst [vmem:[%s271 + $0x1c8] sm:$0xff] %v3002
      %3067 = vst [vmem:[%s271 + $0x1d0] sm:$0xff] %v3003
      %3068 = vst [vmem:[%s271 + $0x1d8] sm:$0xff] %v3004
      %3069 = vst [vmem:[%s271 + $0x1e0] sm:$0xff] %v3005
      %3070 = vst [vmem:[%s271 + $0x1e8] sm:$0xff] %v3006
      %3071 = vst [vmem:[%s271 + $0x1f0] sm:$0xff] %v3007
      %3072 = vst [vmem:[%s271 + $0x1f8] sm:$0xff] %v3008
      %p3073 = scmp.lt.s32.totalorder %s17, 1
      %s3074 = scalar_select %p3073, %s17, 1
      %s3075 = smul.addr %s3074, 64
      %s3076 = smul.addr %s3075, 8
      %s3077 = scalar_lea.vmem %s6, %s3076
      // Predicated region
      $region45: #{pixelwise_xcorr.1} parent=43 // pred_check
        %p3078 = pneg %p171
      $region46: #{pixelwise_xcorr.1} parent=43 // pred_check_branch
        %3080 = sbr.rel (%p3078) target = $region48
      $region47: #{pixelwise_xcorr.1} parent=43 // pred_region
        _
      $region48: #{pixelwise_xcorr.1} parent=43 // pred_fallthru
        _
    $region44: #{pixelwise_xcorr.1} parent=5 // pred_fallthru
      _
    %p3081 = scmp.le.s32.totalorder 2, %s12
    // Predicated region
    $region49: #{pixelwise_xcorr.1} parent=5 // pred_check
      %p3082 = pneg %p3081
    $region50: #{pixelwise_xcorr.1} parent=5 // pred_check_branch
      %3084 = sbr.rel (%p3082) target = $region52
    $region51: #{pixelwise_xcorr.1} parent=5 // pred_region
      %s3085 = ssub.s32 %s12, 2
      // Predicated region
      $region53: #{pixelwise_xcorr.1} parent=51 // pred_check
        %p3086 = pneg %p177
      $region54: #{pixelwise_xcorr.1} parent=51 // pred_check_branch
        %3088 = sbr.rel (%p3086) target = $region56
      $region55: #{pixelwise_xcorr.1} parent=51 // pred_region
        %p3089 = scmp.lt.s32.totalorder %s18, 1
        %s3090 = scalar_select %p3089, %s18, 1
        %s3091 = smul.addr %s3090, 64
        %s3092 = smul.addr %s3091, 8
        %s3093 = scalar_lea.vmem %s6, %s3092
      $region56: #{pixelwise_xcorr.1} parent=51 // pred_fallthru
        _
    $region52: #{pixelwise_xcorr.1} parent=5 // pred_fallthru
      _
  $region6: #{pixelwise_xcorr.1} parent=0 // loop_footer
    %s16 = sadd.s32 1, %s12
  $region7: #{pixelwise_xcorr.1} parent=0 // loop_footer_branch
    %11 = sbr.rel target = $region3
  $region8: #{pixelwise_xcorr.1} parent=0 // loop_exit
    _

</llo_original>
